<compile_context>
chip_gen: v6e
topology: v6e:2x2x1
jax: 0.10.0
libtpu: 0.0.40
codegen_flags: <defaults>
</compile_context>

<pallas_src>
import functools

import jax
import jax.numpy as jnp
from jax.experimental import pallas as pl
from jax.experimental.pallas import tpu as pltpu


def _round_up(x, m):
    return (x + m - 1) // m * m


def score_network_kernel(q_ref, key_ref, wq_ref, bq_ref, wo_ref, bo_ref,
                         out_ref, qp_ref):
    # q_ref:   [Bt, Qd]       VMEM  (per-B-tile slice of query)
    # key_ref: [Bt, St, Hp]   VMEM  (pipelined key tile)
    # wq_ref:  [Qd, Hp]       VMEM  (query_proj.weight, transposed, H-padded)
    # bq_ref:  [1, Hp]        VMEM  (query_proj.bias, H-padded)
    # wo_ref:  [1, Hp]        VMEM  (hidden_to_out_proj.weight, H-padded)
    # bo_ref:  [1, 1]         SMEM  (hidden_to_out_proj.bias, scalar)
    # out_ref: [Bt, St]       VMEM  (lane-dense output tile)
    # qp_ref:  [Bt, Hp]       VMEM scratch (query projection, hoisted over S)

    # Hoist the query projection out of the S loop: compute once per B tile.
    @pl.when(pl.program_id(1) == 0)
    def _():
        qp = jnp.dot(q_ref[...], wq_ref[...],
                     preferred_element_type=jnp.float32)
        qp_ref[...] = qp + bq_ref[...]

    # Widen key (no-op for f32 input; enables bf16 key storage upstream).
    k = key_ref[...].astype(jnp.float32)                       # [Bt, St, Hp]
    hidden = jnp.tanh(qp_ref[...][:, None, :] + k)             # [Bt, St, Hp]
    # hidden_to_out_proj: VPU multiply + XLU lane-reduce (free next to tanh).
    out = jnp.sum(hidden * wo_ref[...], axis=-1)               # [Bt, St]
    out_ref[...] = out + bo_ref[0, 0]


@functools.partial(jax.jit, static_argnames=("block_b", "block_s"))
def score_network(query, key, wq, bq, wo, bo, *, block_b=8, block_s=512):
    """query: [B, Qd] f32, key: [B, S, H] -> [B, S, 1] f32."""
    B, Qd = query.shape
    _, S, H = key.shape

    # Layout padding: H -> multiple of 128 (lane axis), B -> multiple of Bt,
    # S -> multiple of the S tile (lane-dense, unmasked output stores).
    Hp = _round_up(H, 128)
    Bt = block_b
    Bp = _round_up(B, Bt)

    # Keep the per-buffer key tile at ~<=4 MiB (double-buffered by BlockSpec)
    # so tiling fits v7x's tighter VMEM while staying large enough (>=128 rows,
    # up to block_s) to amortize per-step overhead on v5e/v6e.
    tile_budget_bytes = 4 * 1024 * 1024
    st_cap = max(128, (tile_budget_bytes // (Bt * Hp * 4)) // 128 * 128)
    St = min(block_s, st_cap, _round_up(S, 128))
    Sp = _round_up(S, St)

    f32 = jnp.float32
    query_p = jnp.pad(query.astype(f32), ((0, Bp - B), (0, 0)))
    key_p = jnp.pad(key, ((0, Bp - B), (0, Sp - S), (0, Hp - H)))
    wq_p = jnp.pad(wq.astype(f32), ((0, 0), (0, Hp - H)))
    bq_p = jnp.pad(bq.astype(f32), ((0, 0), (0, Hp - H)))
    wo_p = jnp.pad(wo.astype(f32), ((0, 0), (0, Hp - H)))
    bo_p = bo.astype(f32).reshape(1, 1)

    grid = (Bp // Bt, Sp // St)

    out = pl.pallas_call(
        score_network_kernel,
        out_shape=jax.ShapeDtypeStruct((Bp, Sp), jnp.float32),
        grid_spec=pltpu.PrefetchScalarGridSpec(
            num_scalar_prefetch=0,
            grid=grid,
            in_specs=[
                pl.BlockSpec((Bt, Qd), lambda bi, si: (bi, 0)),      # query
                pl.BlockSpec((Bt, St, Hp), lambda bi, si: (bi, si, 0)),  # key
                pl.BlockSpec(memory_space=pltpu.MemorySpace.VMEM),   # Wq
                pl.BlockSpec(memory_space=pltpu.MemorySpace.VMEM),   # bq
                pl.BlockSpec(memory_space=pltpu.MemorySpace.VMEM),   # Wo
                pl.BlockSpec(memory_space=pltpu.MemorySpace.SMEM),   # bo scalar
            ],
            out_specs=pl.BlockSpec((Bt, St), lambda bi, si: (bi, si)),
            scratch_shapes=[pltpu.VMEM((Bt, Hp), jnp.float32)],      # qp
        ),
        compiler_params=pltpu.CompilerParams(
            # B tiles are independent -> shard across v7x's two TensorCores;
            # S carries the qp scratch -> "arbitrary".
            dimension_semantics=("parallel", "arbitrary"),
            vmem_limit_bytes=32 * 1024 * 1024,
        ),
    )(query_p, key_p, wq_p, bq_p, wo_p, bo_p)

    return out[:B, :S, None]


def score_network_ref(query, key, wq, bq, wo, bo):
    qp = query @ wq + bq                     # [B, H]
    hidden = jnp.tanh(qp[:, None, :] + key)  # [B, S, H]
    out = jnp.sum(hidden * wo, axis=-1) + bo[0, 0]
    return out[:, :, None]


if __name__ == "__main__":
    batch, query_dim, hidden_dim, seq_len = 2, 16, 32, 8

    key_rng = jax.random.PRNGKey(0)
    k_q, k_k, k_wq, k_bq, k_wo, k_bo = jax.random.split(key_rng, 6)

    query = jax.random.normal(k_q, (batch, query_dim), dtype=jnp.float32)
    key = jax.random.normal(k_k, (batch, seq_len, hidden_dim), dtype=jnp.float32)

    # Deterministic synthetic parameters (shapes per nn.Linear in __init__,
    # stored pre-transposed: Wq [Qd, H], Wo [1, H]).
    wq = jax.random.normal(k_wq, (query_dim, hidden_dim), dtype=jnp.float32) * 0.1
    bq = jax.random.normal(k_bq, (1, hidden_dim), dtype=jnp.float32) * 0.1
    wo = jax.random.normal(k_wo, (1, hidden_dim), dtype=jnp.float32) * 0.1
    bo = jax.random.normal(k_bo, (1, 1), dtype=jnp.float32) * 0.1

    out = score_network(query, key, wq, bq, wo, bo)
    jax.block_until_ready(out)

    ref = score_network_ref(query, key, wq, bq, wo, bo)
    assert out.shape == (batch, seq_len, 1)
    assert jnp.allclose(out, ref, atol=1e-5, rtol=1e-5), (
        jnp.max(jnp.abs(out - ref)))

    print("KERNEL_OK")
</pallas_src>

<mosaic_0001>
module attributes {stable_mosaic.version = 11 : i64} {
  func.func @score_network_kernel(%arg0: i32, %arg1: i32, %arg2: memref<8x16xf32, #tpu.memory_space<vmem>>, %arg3: memref<8x128x128xf32, #tpu.memory_space<vmem>>, %arg4: memref<16x128xf32, #tpu.memory_space<vmem>>, %arg5: memref<1x128xf32, #tpu.memory_space<vmem>>, %arg6: memref<1x128xf32, #tpu.memory_space<vmem>>, %arg7: memref<1x1xf32, #tpu.memory_space<smem>>, %arg8: memref<8x128xf32, #tpu.memory_space<vmem>>, %arg9: memref<8x128xf32, #tpu.memory_space<vmem>>) attributes {dimension_semantics = [#tpu.dimension_semantics<parallel>, #tpu.dimension_semantics<arbitrary>], iteration_bounds = array<i64: 1, 1>, scalar_prefetch = 0 : i64, scratch_operands = 1 : i64, tpu.core_type = #tpu.core_type<tc>, window_params = [{transform_indices = @transform_0, window_bounds = array<i64: 8, 16>}, {transform_indices = @transform_1, window_bounds = array<i64: 8, 128, 128>}, {pipeline_mode = #tpu.pipeline_mode<synchronous>, transform_indices = @transform_2, window_bounds = array<i64: 16, 128>}, {pipeline_mode = #tpu.pipeline_mode<synchronous>, transform_indices = @transform_3, window_bounds = array<i64: 1, 128>}, {pipeline_mode = #tpu.pipeline_mode<synchronous>, transform_indices = @transform_4, window_bounds = array<i64: 1, 128>}, {transform_indices = @transform_5, window_bounds = array<i64: 1, 1>}, {transform_indices = @transform_6, window_bounds = array<i64: 8, 128>}]} {
    %c0_i32 = arith.constant 0 : i32
    %0 = arith.cmpi eq, %arg1, %c0_i32 : i32
    %1 = arith.extui %0 : i1 to i32
    %c0_i32_0 = arith.constant 0 : i32
    %2 = arith.cmpi ne, %1, %c0_i32_0 : i32
    scf.if %2 {
      %c0_11 = arith.constant 0 : index
      %c0_12 = arith.constant 0 : index
      %18 = vector.load %arg2[%c0_11, %c0_12] : memref<8x16xf32, #tpu.memory_space<vmem>>, vector<8x16xf32>
      %c0_13 = arith.constant 0 : index
      %c0_14 = arith.constant 0 : index
      %19 = vector.load %arg4[%c0_13, %c0_14] : memref<16x128xf32, #tpu.memory_space<vmem>>, vector<16x128xf32>
      %cst_15 = arith.constant dense<0.000000e+00> : vector<8x128xf32>
      %20 = tpu.matmul %18, %19, %cst_15 {dimension_numbers = #tpu.dot_dimension_numbers<[1], [0], [0], [1], [0, 0, 1, 1], [], []>} : vector<8x16xf32>, vector<16x128xf32>, vector<8x128xf32> -> vector<8x128xf32>
      %c0_16 = arith.constant 0 : index
      %c0_17 = arith.constant 0 : index
      %21 = vector.load %arg5[%c0_16, %c0_17] : memref<1x128xf32, #tpu.memory_space<vmem>>, vector<1x128xf32>
      %22 = vector.broadcast %21 : vector<1x128xf32> to vector<8x128xf32>
      %23 = arith.addf %20, %22 : vector<8x128xf32>
      %c0_18 = arith.constant 0 : index
      %c0_19 = arith.constant 0 : index
      %24 = vector.load %arg9[%c0_18, %c0_19] : memref<8x128xf32, #tpu.memory_space<vmem>>, vector<8x128xf32>
      tpu.vector_store %arg9[%c0_18, %c0_19], %23 {strides = array<i32>} : memref<8x128xf32, #tpu.memory_space<vmem>>, vector<8x128xf32>,
    } else {
    }
    %c0 = arith.constant 0 : index
    %c0_1 = arith.constant 0 : index
    %c0_2 = arith.constant 0 : index
    %3 = vector.load %arg3[%c0, %c0_1, %c0_2] : memref<8x128x128xf32, #tpu.memory_space<vmem>>, vector<8x128x128xf32>
    %c0_3 = arith.constant 0 : index
    %c0_4 = arith.constant 0 : index
    %4 = vector.load %arg9[%c0_3, %c0_4] : memref<8x128xf32, #tpu.memory_space<vmem>>, vector<8x128xf32>
    %5 = vector.shape_cast %4 : vector<8x128xf32> to vector<8x1x128xf32>
    %6 = vector.broadcast %5 : vector<8x1x128xf32> to vector<8x128x128xf32>
    %7 = arith.addf %6, %3 : vector<8x128x128xf32>
    %8 = math.tanh %7 : vector<8x128x128xf32>
    %c0_5 = arith.constant 0 : index
    %c0_6 = arith.constant 0 : index
    %9 = vector.load %arg6[%c0_5, %c0_6] : memref<1x128xf32, #tpu.memory_space<vmem>>, vector<1x128xf32>
    %10 = vector.shape_cast %9 : vector<1x128xf32> to vector<1x1x128xf32>
    %11 = vector.broadcast %10 : vector<1x1x128xf32> to vector<8x128x128xf32>
    %12 = arith.mulf %8, %11 : vector<8x128x128xf32>
    %cst = arith.constant dense<0.000000e+00> : vector<8x128xf32>
    %13 = vector.multi_reduction <add>, %12, %cst [2] : vector<8x128x128xf32> to vector<8x128xf32>
    %c0_7 = arith.constant 0 : index
    %c0_8 = arith.constant 0 : index
    %14 = memref.load %arg7[%c0_7, %c0_8] : memref<1x1xf32, #tpu.memory_space<smem>>
    %15 = vector.broadcast %14 : f32 to vector<8x128xf32>
    %16 = arith.addf %13, %15 : vector<8x128xf32>
    %c0_9 = arith.constant 0 : index
    %c0_10 = arith.constant 0 : index
    %17 = vector.load %arg8[%c0_9, %c0_10] : memref<8x128xf32, #tpu.memory_space<vmem>>, vector<8x128xf32>
    tpu.vector_store %arg8[%c0_9, %c0_10], %16 {strides = array<i32>} : memref<8x128xf32, #tpu.memory_space<vmem>>, vector<8x128xf32>,
    return
  }
  func.func @transform_0(%arg0: i32, %arg1: i32) -> (i32, i32) {
    %c0_i32 = arith.constant 0 : i32
    %c0_i32_0 = arith.constant 0 : i32
    return %arg0, %c0_i32 : i32, i32
  }
  func.func @transform_1(%arg0: i32, %arg1: i32) -> (i32, i32, i32) {
    %c0_i32 = arith.constant 0 : i32
    %c0_i32_0 = arith.constant 0 : i32
    return %arg0, %arg1, %c0_i32 : i32, i32, i32
  }
  func.func @transform_2(%arg0: i32, %arg1: i32) -> (i32, i32) {
    %c0_i32 = arith.constant 0 : i32
    %c0_i32_0 = arith.constant 0 : i32
    %c0_i32_1 = arith.constant 0 : i32
    return %c0_i32, %c0_i32_0 : i32, i32
  }
  func.func @transform_3(%arg0: i32, %arg1: i32) -> (i32, i32) {
    %c0_i32 = arith.constant 0 : i32
    %c0_i32_0 = arith.constant 0 : i32
    %c0_i32_1 = arith.constant 0 : i32
    return %c0_i32, %c0_i32_0 : i32, i32
  }
  func.func @transform_4(%arg0: i32, %arg1: i32) -> (i32, i32) {
    %c0_i32 = arith.constant 0 : i32
    %c0_i32_0 = arith.constant 0 : i32
    %c0_i32_1 = arith.constant 0 : i32
    return %c0_i32, %c0_i32_0 : i32, i32
  }
  func.func @transform_5(%arg0: i32, %arg1: i32) -> (i32, i32) {
    %c0_i32 = arith.constant 0 : i32
    %c0_i32_0 = arith.constant 0 : i32
    %c0_i32_1 = arith.constant 0 : i32
    return %c0_i32, %c0_i32_0 : i32, i32
  }
  func.func @transform_6(%arg0: i32, %arg1: i32) -> (i32, i32) {
    %c0_i32 = arith.constant 0 : i32
    return %arg0, %arg1 : i32, i32
  }
}

</mosaic_0001>

<llo_original>
// kernel: score_network.1
$region0: #{score_network.1}
  #allocation0 [shape = 'u32[]', space=smem, size = 0x4, offset = 0x4, fixed_abs, tag = 'smem constant byte address 0x4 - core index']
  #allocation1 [shape = 'u32[144,128]{1,0:T(1,128)}', space=vmem, size = 0x12000, scoped, tag = 'internal scratch']
  #allocation2 [shape = 'f32[8,128]{1,0:T(8,128)}', space=vmem, size = 0x1000, scoped, tag = 'scratch operand']
  #allocation3 [shape = 'f32[1,1]{1,0:T(1,128)S(6)}', space=smem, size = 0x200, scoped, tag = 'scoped memory for score_network.1']
  %s0 = inlined_call_operand.vmem [shape: f32[8,16], index: 0, kind: input, shape index: {}]
  %s1 = inlined_call_operand.vmem [shape: f32[8,128,128], index: 1, kind: input, shape index: {}]
  %s2 = inlined_call_operand.vmem [shape: f32[16,128], index: 2, kind: input, shape index: {}]
  %s3 = inlined_call_operand.vmem [shape: f32[1,128], index: 3, kind: input, shape index: {}]
  %s4 = inlined_call_operand.vmem [shape: f32[1,128], index: 4, kind: input, shape index: {}]
  %s5 = inlined_call_operand.<no memory space> [shape: f32[1,1], index: 5, kind: input, shape index: {}]
  %s6 = inlined_call_operand.vmem [shape: f32[8,128], index: 6, kind: output, shape index: {}]
  %s7 = sld [smem:[#allocation0]]
  $region38: #{score_network.1} parent=0
    _
  %s9 = ssub.s32 1, %s7
  %s10 = scalar_select 0, %s9, %s7
  %11 = sst [smem:[#allocation3]] %s5
  // Predicated region
  $region2: #{score_network.1} parent=0 // pred_check
    _
  $region3: #{score_network.1} parent=0 // pred_check_branch
    %13 = sbr.rel (0) target = $region5
  $region4: #{score_network.1} parent=0 // pred_region
    _
  $region5: #{score_network.1} parent=0 // pred_fallthru
    _
  // Predicated region
  $region6: #{score_network.1} parent=0 // pred_check
    _
  $region7: #{score_network.1} parent=0 // pred_check_branch
    %15 = sbr.rel (0) target = $region9
  $region8: #{score_network.1} parent=0 // pred_region
    _
  $region9: #{score_network.1} parent=0 // pred_fallthru
    _
  // Predicated region
  $region10: #{score_network.1} parent=0 // pred_check
    _
  $region11: #{score_network.1} parent=0 // pred_check_branch
    %17 = sbr.rel (0) target = $region13
  $region12: #{score_network.1} parent=0 // pred_region
    _
  $region13: #{score_network.1} parent=0 // pred_fallthru
    _
  // Predicated region
  $region14: #{score_network.1} parent=0 // pred_check
    _
  $region15: #{score_network.1} parent=0 // pred_check_branch
    %19 = sbr.rel (0) target = $region17
  $region16: #{score_network.1} parent=0 // pred_region
    _
  $region17: #{score_network.1} parent=0 // pred_fallthru
    _
  // Predicated region
  $region18: #{score_network.1} parent=0 // pred_check
    _
  $region19: #{score_network.1} parent=0 // pred_check_branch
    %21 = sbr.rel (0) target = $region21
  $region20: #{score_network.1} parent=0 // pred_region
    _
  $region21: #{score_network.1} parent=0 // pred_fallthru
    _
  // Predicated region
  $region22: #{score_network.1} parent=0 // pred_check
    _
  $region23: #{score_network.1} parent=0 // pred_check_branch
    %23 = sbr.rel (0) target = $region25
  $region24: #{score_network.1} parent=0 // pred_region
    _
  $region25: #{score_network.1} parent=0 // pred_fallthru
    _
  %p24 = scmp.eq.s32.totalorder 0, 0
  // Predicated region
  $region26: #{score_network.1} parent=0 // pred_check
    %p25 = pneg %p24
  $region27: #{score_network.1} parent=0 // pred_check_branch
    %27 = sbr.rel (%p25) target = $region29
  $region28: #{score_network.1} parent=0 // pred_region
    %v28 = vld [vmem:[%s0] sm:$0xff]
    %v29 = vld [vmem:[%s2] sm:$0xff]
    %v30 = vld [vmem:[%s2 + $0x8] sm:$0xff]
    %v31 = vld [vmem:[%s3] sm:$0x1]
    %v33 = vlaneseq
    %v34 = vshrl.u32 %v33, 7
    %v35 = vsub.s32 0, %v34
    %v36 = vrot.slane %v31, %v35
    %vm38 = vcmask 130048
    %v40 = vsel %vm38, %v28, 0
    %42 = vmatprep.subr.mxu0 0.0
    %43 = vmatpush1.msra.mxu0 0.0
    %44 = vmatprep.subr.mxu0 0.0
    %45 = vmatpush1.msra.mxu0 0.0
    %46 = vmatprep.subr.mxu0 0.0
    %47 = vmatpush1.msra.mxu0 0.0
    %48 = vmatprep.subr.mxu0 0.0
    %49 = vmatpush1.msra.mxu0 0.0
    %50 = vmatprep.subr.mxu0 0.0
    %51 = vmatpush1.msra.mxu0 0.0
    %52 = vmatprep.subr.mxu0 0.0
    %53 = vmatpush1.msra.mxu0 0.0
    %54 = vmatprep.subr.mxu0 0.0
    %55 = vmatpush1.msra.mxu0 0.0
    %56 = vmatprep.subr.mxu0 0.0
    %57 = vmatpush1.msra.mxu0 0.0
    %58 = vmatprep.subr.mxu0 0.0
    %59 = vmatpush1.msra.mxu0 0.0
    %60 = vmatprep.subr.mxu0 0.0
    %61 = vmatpush1.msra.mxu0 0.0
    %62 = vmatprep.subr.mxu0 0.0
    %63 = vmatpush1.msra.mxu0 0.0
    %64 = vmatprep.subr.mxu0 0.0
    %65 = vmatpush1.msra.mxu0 0.0
    %66 = vmatprep.subr.mxu0 0.0
    %67 = vmatpush1.msra.mxu0 0.0
    %68 = vmatprep.subr.mxu0 0.0
    %69 = vmatpush1.msra.mxu0 0.0
    %70 = vmatprep.subr.mxu0 0.0
    %71 = vmatpush1.msra.mxu0 %v30
    %72 = vmatprep.subr.mxu0 0.0
    %73 = vmatpush1.msra.mxu0 %v29
    %74 = vmatprep.subr.mxu0 0.0
    %75 = vmatpush2.msra.mxu0 0.0
    %76 = vmatprep.subr.mxu0 0.0
    %77 = vmatpush2.msra.mxu0 0.0
    %78 = vmatprep.subr.mxu0 0.0
    %79 = vmatpush2.msra.mxu0 0.0
    %80 = vmatprep.subr.mxu0 0.0
    %81 = vmatpush2.msra.mxu0 0.0
    %82 = vmatprep.subr.mxu0 0.0
    %83 = vmatpush2.msra.mxu0 0.0
    %84 = vmatprep.subr.mxu0 0.0
    %85 = vmatpush2.msra.mxu0 0.0
    %86 = vmatprep.subr.mxu0 0.0
    %87 = vmatpush2.msra.mxu0 0.0
    %88 = vmatprep.subr.mxu0 0.0
    %89 = vmatpush2.msra.mxu0 0.0
    %90 = vmatprep.subr.mxu0 0.0
    %91 = vmatpush2.msra.mxu0 0.0
    %92 = vmatprep.subr.mxu0 0.0
    %93 = vmatpush2.msra.mxu0 0.0
    %94 = vmatprep.subr.mxu0 0.0
    %95 = vmatpush2.msra.mxu0 0.0
    %96 = vmatprep.subr.mxu0 0.0
    %97 = vmatpush2.msra.mxu0 0.0
    %98 = vmatprep.subr.mxu0 0.0
    %99 = vmatpush2.msra.mxu0 0.0
    %100 = vmatprep.subr.mxu0 0.0
    %101 = vmatpush2.msra.mxu0 0.0
    %102 = vmatprep.subr.mxu0 0.0
    %103 = vmatpush2.msra.mxu0 0.0
    %104 = vmatprep.subr.mxu0 0.0
    %105 = vmatpush2.msra.mxu0 0.0
    %106 = vmatprep.mubr.f32.mxu0 0.0
    %107 = vmatmul.mubr.f32.gmra.mxu0 %v40
    %v108 = vpop.f32.mrf.mxu0
    %v109 = vadd.f32 %v36, %v108
    %v110 = vpop.f32.mrf.mxu0
    %111 = vdwg.mxu0
    %112 = vst [vmem:[#allocation2] sm:$0xff] %v109
  $region29: #{score_network.1} parent=0 // pred_fallthru
    _
  %v113 = vld [vmem:[%s1] sm:$0xff]
  %v114 = vld [vmem:[%s1 + $0x8] sm:$0xff]
  %v115 = vld [vmem:[%s1 + $0x10] sm:$0xff]
  %v116 = vld [vmem:[%s1 + $0x18] sm:$0xff]
  %v117 = vld [vmem:[%s1 + $0x20] sm:$0xff]
  %v118 = vld [vmem:[%s1 + $0x28] sm:$0xff]
  %v119 = vld [vmem:[%s1 + $0x30] sm:$0xff]
  %v120 = vld [vmem:[%s1 + $0x38] sm:$0xff]
  %v121 = vld [vmem:[%s1 + $0x40] sm:$0xff]
  %v122 = vld [vmem:[%s1 + $0x48] sm:$0xff]
  %v123 = vld [vmem:[%s1 + $0x50] sm:$0xff]
  %v124 = vld [vmem:[%s1 + $0x58] sm:$0xff]
  %v125 = vld [vmem:[%s1 + $0x60] sm:$0xff]
  %v126 = vld [vmem:[%s1 + $0x68] sm:$0xff]
  %v127 = vld [vmem:[%s1 + $0x70] sm:$0xff]
  %v128 = vld [vmem:[%s1 + $0x78] sm:$0xff]
  %v129 = vld [vmem:[%s1 + $0x80] sm:$0xff]
  %v130 = vld [vmem:[%s1 + $0x88] sm:$0xff]
  %v131 = vld [vmem:[%s1 + $0x90] sm:$0xff]
  %v132 = vld [vmem:[%s1 + $0x98] sm:$0xff]
  %v133 = vld [vmem:[%s1 + $0xa0] sm:$0xff]
  %v134 = vld [vmem:[%s1 + $0xa8] sm:$0xff]
  %v135 = vld [vmem:[%s1 + $0xb0] sm:$0xff]
  %v136 = vld [vmem:[%s1 + $0xb8] sm:$0xff]
  %v137 = vld [vmem:[%s1 + $0xc0] sm:$0xff]
  %v138 = vld [vmem:[%s1 + $0xc8] sm:$0xff]
  %v139 = vld [vmem:[%s1 + $0xd0] sm:$0xff]
  %v140 = vld [vmem:[%s1 + $0xd8] sm:$0xff]
  %v141 = vld [vmem:[%s1 + $0xe0] sm:$0xff]
  %v142 = vld [vmem:[%s1 + $0xe8] sm:$0xff]
  %v143 = vld [vmem:[%s1 + $0xf0] sm:$0xff]
  %v144 = vld [vmem:[%s1 + $0xf8] sm:$0xff]
  %v145 = vld [vmem:[%s1 + $0x100] sm:$0xff]
  %v146 = vld [vmem:[%s1 + $0x108] sm:$0xff]
  %v147 = vld [vmem:[%s1 + $0x110] sm:$0xff]
  %v148 = vld [vmem:[%s1 + $0x118] sm:$0xff]
  %v149 = vld [vmem:[%s1 + $0x120] sm:$0xff]
  %v150 = vld [vmem:[%s1 + $0x128] sm:$0xff]
  %v151 = vld [vmem:[%s1 + $0x130] sm:$0xff]
  %v152 = vld [vmem:[%s1 + $0x138] sm:$0xff]
  %v153 = vld [vmem:[%s1 + $0x140] sm:$0xff]
  %v154 = vld [vmem:[%s1 + $0x148] sm:$0xff]
  %v155 = vld [vmem:[%s1 + $0x150] sm:$0xff]
  %v156 = vld [vmem:[%s1 + $0x158] sm:$0xff]
  %v157 = vld [vmem:[%s1 + $0x160] sm:$0xff]
  %v158 = vld [vmem:[%s1 + $0x168] sm:$0xff]
  %v159 = vld [vmem:[%s1 + $0x170] sm:$0xff]
  %v160 = vld [vmem:[%s1 + $0x178] sm:$0xff]
  %v161 = vld [vmem:[%s1 + $0x180] sm:$0xff]
  %v162 = vld [vmem:[%s1 + $0x188] sm:$0xff]
  %v163 = vld [vmem:[%s1 + $0x190] sm:$0xff]
  %v164 = vld [vmem:[%s1 + $0x198] sm:$0xff]
  %v165 = vld [vmem:[%s1 + $0x1a0] sm:$0xff]
  %v166 = vld [vmem:[%s1 + $0x1a8] sm:$0xff]
  %v167 = vld [vmem:[%s1 + $0x1b0] sm:$0xff]
  %v168 = vld [vmem:[%s1 + $0x1b8] sm:$0xff]
  %v169 = vld [vmem:[%s1 + $0x1c0] sm:$0xff]
  %v170 = vld [vmem:[%s1 + $0x1c8] sm:$0xff]
  %v171 = vld [vmem:[%s1 + $0x1d0] sm:$0xff]
  %v172 = vld [vmem:[%s1 + $0x1d8] sm:$0xff]
  %v173 = vld [vmem:[%s1 + $0x1e0] sm:$0xff]
  %v174 = vld [vmem:[%s1 + $0x1e8] sm:$0xff]
  %v175 = vld [vmem:[%s1 + $0x1f0] sm:$0xff]
  %v176 = vld [vmem:[%s1 + $0x1f8] sm:$0xff]
  %v177 = vld [vmem:[%s1 + $0x200] sm:$0xff]
  %v178 = vld [vmem:[%s1 + $0x208] sm:$0xff]
  %v179 = vld [vmem:[%s1 + $0x210] sm:$0xff]
  %v180 = vld [vmem:[%s1 + $0x218] sm:$0xff]
  %v181 = vld [vmem:[%s1 + $0x220] sm:$0xff]
  %v182 = vld [vmem:[%s1 + $0x228] sm:$0xff]
  %v183 = vld [vmem:[%s1 + $0x230] sm:$0xff]
  %v184 = vld [vmem:[%s1 + $0x238] sm:$0xff]
  %v185 = vld [vmem:[%s1 + $0x240] sm:$0xff]
  %v186 = vld [vmem:[%s1 + $0x248] sm:$0xff]
  %v187 = vld [vmem:[%s1 + $0x250] sm:$0xff]
  %v188 = vld [vmem:[%s1 + $0x258] sm:$0xff]
  %v189 = vld [vmem:[%s1 + $0x260] sm:$0xff]
  %v190 = vld [vmem:[%s1 + $0x268] sm:$0xff]
  %v191 = vld [vmem:[%s1 + $0x270] sm:$0xff]
  %v192 = vld [vmem:[%s1 + $0x278] sm:$0xff]
  %v193 = vld [vmem:[%s1 + $0x280] sm:$0xff]
  %v194 = vld [vmem:[%s1 + $0x288] sm:$0xff]
  %v195 = vld [vmem:[%s1 + $0x290] sm:$0xff]
  %v196 = vld [vmem:[%s1 + $0x298] sm:$0xff]
  %v197 = vld [vmem:[%s1 + $0x2a0] sm:$0xff]
  %v198 = vld [vmem:[%s1 + $0x2a8] sm:$0xff]
  %v199 = vld [vmem:[%s1 + $0x2b0] sm:$0xff]
  %v200 = vld [vmem:[%s1 + $0x2b8] sm:$0xff]
  %v201 = vld [vmem:[%s1 + $0x2c0] sm:$0xff]
  %v202 = vld [vmem:[%s1 + $0x2c8] sm:$0xff]
  %v203 = vld [vmem:[%s1 + $0x2d0] sm:$0xff]
  %v204 = vld [vmem:[%s1 + $0x2d8] sm:$0xff]
  %v205 = vld [vmem:[%s1 + $0x2e0] sm:$0xff]
  %v206 = vld [vmem:[%s1 + $0x2e8] sm:$0xff]
  %v207 = vld [vmem:[%s1 + $0x2f0] sm:$0xff]
  %v208 = vld [vmem:[%s1 + $0x2f8] sm:$0xff]
  %v209 = vld [vmem:[%s1 + $0x300] sm:$0xff]
  %v210 = vld [vmem:[%s1 + $0x308] sm:$0xff]
  %v211 = vld [vmem:[%s1 + $0x310] sm:$0xff]
  %v212 = vld [vmem:[%s1 + $0x318] sm:$0xff]
  %v213 = vld [vmem:[%s1 + $0x320] sm:$0xff]
  %v214 = vld [vmem:[%s1 + $0x328] sm:$0xff]
  %v215 = vld [vmem:[%s1 + $0x330] sm:$0xff]
  %v216 = vld [vmem:[%s1 + $0x338] sm:$0xff]
  %v217 = vld [vmem:[%s1 + $0x340] sm:$0xff]
  %v218 = vld [vmem:[%s1 + $0x348] sm:$0xff]
  %v219 = vld [vmem:[%s1 + $0x350] sm:$0xff]
  %v220 = vld [vmem:[%s1 + $0x358] sm:$0xff]
  %v221 = vld [vmem:[%s1 + $0x360] sm:$0xff]
  %v222 = vld [vmem:[%s1 + $0x368] sm:$0xff]
  %v223 = vld [vmem:[%s1 + $0x370] sm:$0xff]
  %v224 = vld [vmem:[%s1 + $0x378] sm:$0xff]
  %v225 = vld [vmem:[%s1 + $0x380] sm:$0xff]
  %v226 = vld [vmem:[%s1 + $0x388] sm:$0xff]
  %v227 = vld [vmem:[%s1 + $0x390] sm:$0xff]
  %v228 = vld [vmem:[%s1 + $0x398] sm:$0xff]
  %v229 = vld [vmem:[%s1 + $0x3a0] sm:$0xff]
  %v230 = vld [vmem:[%s1 + $0x3a8] sm:$0xff]
  %v231 = vld [vmem:[%s1 + $0x3b0] sm:$0xff]
  %v232 = vld [vmem:[%s1 + $0x3b8] sm:$0xff]
  %v233 = vld [vmem:[%s1 + $0x3c0] sm:$0xff]
  %v234 = vld [vmem:[%s1 + $0x3c8] sm:$0xff]
  %v235 = vld [vmem:[%s1 + $0x3d0] sm:$0xff]
  %v236 = vld [vmem:[%s1 + $0x3d8] sm:$0xff]
  %v237 = vld [vmem:[%s1 + $0x3e0] sm:$0xff]
  %v238 = vld [vmem:[%s1 + $0x3e8] sm:$0xff]
  %v239 = vld [vmem:[%s1 + $0x3f0] sm:$0xff]
  %v240 = vld [vmem:[%s1 + $0x3f8] sm:$0xff]
  %v241 = vld [vmem:[#allocation2] sm:$0xff]
  %v243 = vcombine.high %v241, %v241
  %v245 = vunpack.c.l.s4 1966171168
  %v246 = vunpack.c.0.s8 %v245
  %v247 = vlaneseq
  %v248 = vshrl.u32 %v247, 7
  %v249 = vsub.s32 %v246, %v248
  %v250 = vrot.slane %v241, %v249
  %v252 = vunpack.c.l.s4 1966171168
  %v253 = vunpack.c.0.s8 %v252
  %v254 = vlaneseq
  %v255 = vshrl.u32 %v254, 7
  %v256 = vsub.s32 %v253, %v255
  %v257 = vrot.slane %v243, %v256
  %v258 = vcombine.high %v250, %v250
  %v259 = vcombine.high %v257, %v257
  %v261 = vunpack.c.l.s4 1966171168
  %v262 = vunpack.c.0.s8 %v261
  %v263 = vlaneseq
  %v264 = vshrl.u32 %v263, 7
  %v265 = vsub.s32 %v262, %v264
  %v266 = vrot.slane %v250, %v265
  %v268 = vunpack.c.l.s4 1966171168
  %v269 = vunpack.c.0.s8 %v268
  %v270 = vlaneseq
  %v271 = vshrl.u32 %v270, 7
  %v272 = vsub.s32 %v269, %v271
  %v273 = vrot.slane %v257, %v272
  %v275 = vunpack.c.l.s4 1966171168
  %v276 = vunpack.c.0.s8 %v275
  %v277 = vlaneseq
  %v278 = vshrl.u32 %v277, 7
  %v279 = vsub.s32 %v276, %v278
  %v280 = vrot.slane %v258, %v279
  %v282 = vunpack.c.l.s4 1966171168
  %v283 = vunpack.c.0.s8 %v282
  %v284 = vlaneseq
  %v285 = vshrl.u32 %v284, 7
  %v286 = vsub.s32 %v283, %v285
  %v287 = vrot.slane %v259, %v286
  %v288 = vcombine.high %v266, %v266
  %v289 = vcombine.high %v273, %v273
  %v290 = vcombine.high %v280, %v280
  %v291 = vcombine.high %v287, %v287
  %v292 = vlaneseq
  %v293 = vshrl.u32 %v292, 7
  %v294 = vsub.s32 0, %v293
  %v295 = vrot.slane %v266, %v294
  %v296 = vlaneseq
  %v297 = vshrl.u32 %v296, 7
  %v298 = vsub.s32 0, %v297
  %v299 = vrot.slane %v280, %v298
  %v300 = vlaneseq
  %v301 = vshrl.u32 %v300, 7
  %v302 = vsub.s32 0, %v301
  %v303 = vrot.slane %v288, %v302
  %v304 = vlaneseq
  %v305 = vshrl.u32 %v304, 7
  %v306 = vsub.s32 0, %v305
  %v307 = vrot.slane %v290, %v306
  %v308 = vlaneseq
  %v309 = vshrl.u32 %v308, 7
  %v310 = vsub.s32 0, %v309
  %v311 = vrot.slane %v273, %v310
  %v312 = vlaneseq
  %v313 = vshrl.u32 %v312, 7
  %v314 = vsub.s32 0, %v313
  %v315 = vrot.slane %v287, %v314
  %v316 = vlaneseq
  %v317 = vshrl.u32 %v316, 7
  %v318 = vsub.s32 0, %v317
  %v319 = vrot.slane %v289, %v318
  %v320 = vlaneseq
  %v321 = vshrl.u32 %v320, 7
  %v322 = vsub.s32 0, %v321
  %v323 = vrot.slane %v291, %v322
  %v332 = vadd.f32 %v295, %v113
  %v333 = vadd.f32 %v295, %v114
  %v334 = vadd.f32 %v295, %v115
  %v335 = vadd.f32 %v295, %v116
  %v336 = vadd.f32 %v295, %v117
  %v337 = vadd.f32 %v295, %v118
  %v338 = vadd.f32 %v295, %v119
  %v339 = vadd.f32 %v295, %v120
  %v340 = vadd.f32 %v295, %v121
  %v341 = vadd.f32 %v295, %v122
  %v342 = vadd.f32 %v295, %v123
  %v343 = vadd.f32 %v295, %v124
  %v344 = vadd.f32 %v295, %v125
  %v345 = vadd.f32 %v295, %v126
  %v346 = vadd.f32 %v295, %v127
  %v347 = vadd.f32 %v295, %v128
  %v348 = vadd.f32 %v299, %v129
  %v349 = vadd.f32 %v299, %v130
  %v350 = vadd.f32 %v299, %v131
  %v351 = vadd.f32 %v299, %v132
  %v352 = vadd.f32 %v299, %v133
  %v353 = vadd.f32 %v299, %v134
  %v354 = vadd.f32 %v299, %v135
  %v355 = vadd.f32 %v299, %v136
  %v356 = vadd.f32 %v299, %v137
  %v357 = vadd.f32 %v299, %v138
  %v358 = vadd.f32 %v299, %v139
  %v359 = vadd.f32 %v299, %v140
  %v360 = vadd.f32 %v299, %v141
  %v361 = vadd.f32 %v299, %v142
  %v362 = vadd.f32 %v299, %v143
  %v363 = vadd.f32 %v299, %v144
  %v364 = vadd.f32 %v303, %v145
  %v365 = vadd.f32 %v303, %v146
  %v366 = vadd.f32 %v303, %v147
  %v367 = vadd.f32 %v303, %v148
  %v368 = vadd.f32 %v303, %v149
  %v369 = vadd.f32 %v303, %v150
  %v370 = vadd.f32 %v303, %v151
  %v371 = vadd.f32 %v303, %v152
  %v372 = vadd.f32 %v303, %v153
  %v373 = vadd.f32 %v303, %v154
  %v374 = vadd.f32 %v303, %v155
  %v375 = vadd.f32 %v303, %v156
  %v376 = vadd.f32 %v303, %v157
  %v377 = vadd.f32 %v303, %v158
  %v378 = vadd.f32 %v303, %v159
  %v379 = vadd.f32 %v303, %v160
  %v380 = vadd.f32 %v307, %v161
  %v381 = vadd.f32 %v307, %v162
  %v382 = vadd.f32 %v307, %v163
  %v383 = vadd.f32 %v307, %v164
  %v384 = vadd.f32 %v307, %v165
  %v385 = vadd.f32 %v307, %v166
  %v386 = vadd.f32 %v307, %v167
  %v387 = vadd.f32 %v307, %v168
  %v388 = vadd.f32 %v307, %v169
  %v389 = vadd.f32 %v307, %v170
  %v390 = vadd.f32 %v307, %v171
  %v391 = vadd.f32 %v307, %v172
  %v392 = vadd.f32 %v307, %v173
  %v393 = vadd.f32 %v307, %v174
  %v394 = vadd.f32 %v307, %v175
  %v395 = vadd.f32 %v307, %v176
  %v396 = vadd.f32 %v311, %v177
  %v397 = vadd.f32 %v311, %v178
  %v398 = vadd.f32 %v311, %v179
  %v399 = vadd.f32 %v311, %v180
  %v400 = vadd.f32 %v311, %v181
  %v401 = vadd.f32 %v311, %v182
  %v402 = vadd.f32 %v311, %v183
  %v403 = vadd.f32 %v311, %v184
  %v404 = vadd.f32 %v311, %v185
  %v405 = vadd.f32 %v311, %v186
  %v406 = vadd.f32 %v311, %v187
  %v407 = vadd.f32 %v311, %v188
  %v408 = vadd.f32 %v311, %v189
  %v409 = vadd.f32 %v311, %v190
  %v410 = vadd.f32 %v311, %v191
  %v411 = vadd.f32 %v311, %v192
  %v412 = vadd.f32 %v315, %v193
  %v413 = vadd.f32 %v315, %v194
  %v414 = vadd.f32 %v315, %v195
  %v415 = vadd.f32 %v315, %v196
  %v416 = vadd.f32 %v315, %v197
  %v417 = vadd.f32 %v315, %v198
  %v418 = vadd.f32 %v315, %v199
  %v419 = vadd.f32 %v315, %v200
  %v420 = vadd.f32 %v315, %v201
  %v421 = vadd.f32 %v315, %v202
  %v422 = vadd.f32 %v315, %v203
  %v423 = vadd.f32 %v315, %v204
  %v424 = vadd.f32 %v315, %v205
  %v425 = vadd.f32 %v315, %v206
  %v426 = vadd.f32 %v315, %v207
  %v427 = vadd.f32 %v315, %v208
  %v428 = vadd.f32 %v319, %v209
  %v429 = vadd.f32 %v319, %v210
  %v430 = vadd.f32 %v319, %v211
  %v431 = vadd.f32 %v319, %v212
  %v432 = vadd.f32 %v319, %v213
  %v433 = vadd.f32 %v319, %v214
  %v434 = vadd.f32 %v319, %v215
  %v435 = vadd.f32 %v319, %v216
  %v436 = vadd.f32 %v319, %v217
  %v437 = vadd.f32 %v319, %v218
  %v438 = vadd.f32 %v319, %v219
  %v439 = vadd.f32 %v319, %v220
  %v440 = vadd.f32 %v319, %v221
  %v441 = vadd.f32 %v319, %v222
  %v442 = vadd.f32 %v319, %v223
  %v443 = vadd.f32 %v319, %v224
  %v444 = vadd.f32 %v323, %v225
  %v445 = vadd.f32 %v323, %v226
  %v446 = vadd.f32 %v323, %v227
  %v447 = vadd.f32 %v323, %v228
  %v448 = vadd.f32 %v323, %v229
  %v449 = vadd.f32 %v323, %v230
  %v450 = vadd.f32 %v323, %v231
  %v451 = vadd.f32 %v323, %v232
  %v452 = vadd.f32 %v323, %v233
  %v453 = vadd.f32 %v323, %v234
  %v454 = vadd.f32 %v323, %v235
  %v455 = vadd.f32 %v323, %v236
  %v456 = vadd.f32 %v323, %v237
  %v457 = vadd.f32 %v323, %v238
  %v458 = vadd.f32 %v323, %v239
  %v459 = vadd.f32 %v323, %v240
  %v460 = vtanh.pop %v332
  %v461 = vtanh.pop %v333
  %v462 = vtanh.pop %v334
  %v463 = vtanh.pop %v335
  %v464 = vtanh.pop %v336
  %v465 = vtanh.pop %v337
  %v466 = vtanh.pop %v338
  %v467 = vtanh.pop %v339
  %v468 = vtanh.pop %v340
  %v469 = vtanh.pop %v341
  %v470 = vtanh.pop %v342
  %v471 = vtanh.pop %v343
  %v472 = vtanh.pop %v344
  %v473 = vtanh.pop %v345
  %v474 = vtanh.pop %v346
  %v475 = vtanh.pop %v347
  %v476 = vtanh.pop %v348
  %v477 = vtanh.pop %v349
  %v478 = vtanh.pop %v350
  %v479 = vtanh.pop %v351
  %v480 = vtanh.pop %v352
  %v481 = vtanh.pop %v353
  %v482 = vtanh.pop %v354
  %v483 = vtanh.pop %v355
  %v484 = vtanh.pop %v356
  %v485 = vtanh.pop %v357
  %v486 = vtanh.pop %v358
  %v487 = vtanh.pop %v359
  %v488 = vtanh.pop %v360
  %v489 = vtanh.pop %v361
  %v490 = vtanh.pop %v362
  %v491 = vtanh.pop %v363
  %v492 = vtanh.pop %v364
  %v493 = vtanh.pop %v365
  %v494 = vtanh.pop %v366
  %v495 = vtanh.pop %v367
  %v496 = vtanh.pop %v368
  %v497 = vtanh.pop %v369
  %v498 = vtanh.pop %v370
  %v499 = vtanh.pop %v371
  %v500 = vtanh.pop %v372
  %v501 = vtanh.pop %v373
  %v502 = vtanh.pop %v374
  %v503 = vtanh.pop %v375
  %v504 = vtanh.pop %v376
  %v505 = vtanh.pop %v377
  %v506 = vtanh.pop %v378
  %v507 = vtanh.pop %v379
  %v508 = vtanh.pop %v380
  %v509 = vtanh.pop %v381
  %v510 = vtanh.pop %v382
  %v511 = vtanh.pop %v383
  %v512 = vtanh.pop %v384
  %v513 = vtanh.pop %v385
  %v514 = vtanh.pop %v386
  %v515 = vtanh.pop %v387
  %v516 = vtanh.pop %v388
  %v517 = vtanh.pop %v389
  %v518 = vtanh.pop %v390
  %v519 = vtanh.pop %v391
  %v520 = vtanh.pop %v392
  %v521 = vtanh.pop %v393
  %v522 = vtanh.pop %v394
  %v523 = vtanh.pop %v395
  %v524 = vtanh.pop %v396
  %v525 = vtanh.pop %v397
  %v526 = vtanh.pop %v398
  %v527 = vtanh.pop %v399
  %v528 = vtanh.pop %v400
  %v529 = vtanh.pop %v401
  %v530 = vtanh.pop %v402
  %v531 = vtanh.pop %v403
  %v532 = vtanh.pop %v404
  %v533 = vtanh.pop %v405
  %v534 = vtanh.pop %v406
  %v535 = vtanh.pop %v407
  %v536 = vtanh.pop %v408
  %v537 = vtanh.pop %v409
  %v538 = vtanh.pop %v410
  %v539 = vtanh.pop %v411
  %v540 = vtanh.pop %v412
  %v541 = vtanh.pop %v413
  %v542 = vtanh.pop %v414
  %v543 = vtanh.pop %v415
  %v544 = vtanh.pop %v416
  %v545 = vtanh.pop %v417
  %v546 = vtanh.pop %v418
  %v547 = vtanh.pop %v419
  %v548 = vtanh.pop %v420
  %v549 = vtanh.pop %v421
  %v550 = vtanh.pop %v422
  %v551 = vtanh.pop %v423
  %v552 = vtanh.pop %v424
  %v553 = vtanh.pop %v425
  %v554 = vtanh.pop %v426
  %v555 = vtanh.pop %v427
  %v556 = vtanh.pop %v428
  %v557 = vtanh.pop %v429
  %v558 = vtanh.pop %v430
  %v559 = vtanh.pop %v431
  %v560 = vtanh.pop %v432
  %v561 = vtanh.pop %v433
  %v562 = vtanh.pop %v434
  %v563 = vtanh.pop %v435
  %v564 = vtanh.pop %v436
  %v565 = vtanh.pop %v437
  %v566 = vtanh.pop %v438
  %v567 = vtanh.pop %v439
  %v568 = vtanh.pop %v440
  %v569 = vtanh.pop %v441
  %v570 = vtanh.pop %v442
  %v571 = vtanh.pop %v443
  %v572 = vtanh.pop %v444
  %v573 = vtanh.pop %v445
  %v574 = vtanh.pop %v446
  %v575 = vtanh.pop %v447
  %v576 = vtanh.pop %v448
  %v577 = vtanh.pop %v449
  %v578 = vtanh.pop %v450
  %v579 = vtanh.pop %v451
  %v580 = vtanh.pop %v452
  %v581 = vtanh.pop %v453
  %v582 = vtanh.pop %v454
  %v583 = vtanh.pop %v455
  %v584 = vtanh.pop %v456
  %v585 = vtanh.pop %v457
  %v586 = vtanh.pop %v458
  %v587 = vtanh.pop %v459
  %v588 = vld [vmem:[%s4] sm:$0x1]
  %v590 = vlaneseq
  %v591 = vshrl.u32 %v590, 7
  %v592 = vsub.s32 0, %v591
  %v593 = vrot.slane %v588, %v592
  %v595 = vmul.f32 %v460, %v593
  %v596 = vmul.f32 %v461, %v593
  %v597 = vmul.f32 %v462, %v593
  %v598 = vmul.f32 %v463, %v593
  %v599 = vmul.f32 %v464, %v593
  %v600 = vmul.f32 %v465, %v593
  %v601 = vmul.f32 %v466, %v593
  %v602 = vmul.f32 %v467, %v593
  %v603 = vmul.f32 %v468, %v593
  %v604 = vmul.f32 %v469, %v593
  %v605 = vmul.f32 %v470, %v593
  %v606 = vmul.f32 %v471, %v593
  %v607 = vmul.f32 %v472, %v593
  %v608 = vmul.f32 %v473, %v593
  %v609 = vmul.f32 %v474, %v593
  %v610 = vmul.f32 %v475, %v593
  %v611 = vmul.f32 %v476, %v593
  %v612 = vmul.f32 %v477, %v593
  %v613 = vmul.f32 %v478, %v593
  %v614 = vmul.f32 %v479, %v593
  %v615 = vmul.f32 %v480, %v593
  %v616 = vmul.f32 %v481, %v593
  %v617 = vmul.f32 %v482, %v593
  %v618 = vmul.f32 %v483, %v593
  %v619 = vmul.f32 %v484, %v593
  %v620 = vmul.f32 %v485, %v593
  %v621 = vmul.f32 %v486, %v593
  %v622 = vmul.f32 %v487, %v593
  %v623 = vmul.f32 %v488, %v593
  %v624 = vmul.f32 %v489, %v593
  %v625 = vmul.f32 %v490, %v593
  %v626 = vmul.f32 %v491, %v593
  %v627 = vmul.f32 %v492, %v593
  %v628 = vmul.f32 %v493, %v593
  %v629 = vmul.f32 %v494, %v593
  %v630 = vmul.f32 %v495, %v593
  %v631 = vmul.f32 %v496, %v593
  %v632 = vmul.f32 %v497, %v593
  %v633 = vmul.f32 %v498, %v593
  %v634 = vmul.f32 %v499, %v593
  %v635 = vmul.f32 %v500, %v593
  %v636 = vmul.f32 %v501, %v593
  %v637 = vmul.f32 %v502, %v593
  %v638 = vmul.f32 %v503, %v593
  %v639 = vmul.f32 %v504, %v593
  %v640 = vmul.f32 %v505, %v593
  %v641 = vmul.f32 %v506, %v593
  %v642 = vmul.f32 %v507, %v593
  %v643 = vmul.f32 %v508, %v593
  %v644 = vmul.f32 %v509, %v593
  %v645 = vmul.f32 %v510, %v593
  %v646 = vmul.f32 %v511, %v593
  %v647 = vmul.f32 %v512, %v593
  %v648 = vmul.f32 %v513, %v593
  %v649 = vmul.f32 %v514, %v593
  %v650 = vmul.f32 %v515, %v593
  %v651 = vmul.f32 %v516, %v593
  %v652 = vmul.f32 %v517, %v593
  %v653 = vmul.f32 %v518, %v593
  %v654 = vmul.f32 %v519, %v593
  %v655 = vmul.f32 %v520, %v593
  %v656 = vmul.f32 %v521, %v593
  %v657 = vmul.f32 %v522, %v593
  %v658 = vmul.f32 %v523, %v593
  %v659 = vmul.f32 %v524, %v593
  %v660 = vmul.f32 %v525, %v593
  %v661 = vmul.f32 %v526, %v593
  %v662 = vmul.f32 %v527, %v593
  %v663 = vmul.f32 %v528, %v593
  %v664 = vmul.f32 %v529, %v593
  %v665 = vmul.f32 %v530, %v593
  %v666 = vmul.f32 %v531, %v593
  %v667 = vmul.f32 %v532, %v593
  %v668 = vmul.f32 %v533, %v593
  %v669 = vmul.f32 %v534, %v593
  %v670 = vmul.f32 %v535, %v593
  %v671 = vmul.f32 %v536, %v593
  %v672 = vmul.f32 %v537, %v593
  %v673 = vmul.f32 %v538, %v593
  %v674 = vmul.f32 %v539, %v593
  %v675 = vmul.f32 %v540, %v593
  %v676 = vmul.f32 %v541, %v593
  %v677 = vmul.f32 %v542, %v593
  %v678 = vmul.f32 %v543, %v593
  %v679 = vmul.f32 %v544, %v593
  %v680 = vmul.f32 %v545, %v593
  %v681 = vmul.f32 %v546, %v593
  %v682 = vmul.f32 %v547, %v593
  %v683 = vmul.f32 %v548, %v593
  %v684 = vmul.f32 %v549, %v593
  %v685 = vmul.f32 %v550, %v593
  %v686 = vmul.f32 %v551, %v593
  %v687 = vmul.f32 %v552, %v593
  %v688 = vmul.f32 %v553, %v593
  %v689 = vmul.f32 %v554, %v593
  %v690 = vmul.f32 %v555, %v593
  %v691 = vmul.f32 %v556, %v593
  %v692 = vmul.f32 %v557, %v593
  %v693 = vmul.f32 %v558, %v593
  %v694 = vmul.f32 %v559, %v593
  %v695 = vmul.f32 %v560, %v593
  %v696 = vmul.f32 %v561, %v593
  %v697 = vmul.f32 %v562, %v593
  %v698 = vmul.f32 %v563, %v593
  %v699 = vmul.f32 %v564, %v593
  %v700 = vmul.f32 %v565, %v593
  %v701 = vmul.f32 %v566, %v593
  %v702 = vmul.f32 %v567, %v593
  %v703 = vmul.f32 %v568, %v593
  %v704 = vmul.f32 %v569, %v593
  %v705 = vmul.f32 %v570, %v593
  %v706 = vmul.f32 %v571, %v593
  %v707 = vmul.f32 %v572, %v593
  %v708 = vmul.f32 %v573, %v593
  %v709 = vmul.f32 %v574, %v593
  %v710 = vmul.f32 %v575, %v593
  %v711 = vmul.f32 %v576, %v593
  %v712 = vmul.f32 %v577, %v593
  %v713 = vmul.f32 %v578, %v593
  %v714 = vmul.f32 %v579, %v593
  %v715 = vmul.f32 %v580, %v593
  %v716 = vmul.f32 %v581, %v593
  %v717 = vmul.f32 %v582, %v593
  %v718 = vmul.f32 %v583, %v593
  %v719 = vmul.f32 %v584, %v593
  %v720 = vmul.f32 %v585, %v593
  %v721 = vmul.f32 %v586, %v593
  %v722 = vmul.f32 %v587, %v593
  %723 = vadd.xlane.f32.xlu0 %v595
  %v724 = vpop.xlane.xlu0 %723
  %725 = vadd.xlane.f32.xlu0 %v596
  %v726 = vpop.xlane.xlu0 %725
  %727 = vadd.xlane.f32.xlu0 %v597
  %v728 = vpop.xlane.xlu0 %727
  %729 = vadd.xlane.f32.xlu0 %v598
  %v730 = vpop.xlane.xlu0 %729
  %731 = vadd.xlane.f32.xlu0 %v599
  %v732 = vpop.xlane.xlu0 %731
  %733 = vadd.xlane.f32.xlu0 %v600
  %v734 = vpop.xlane.xlu0 %733
  %735 = vadd.xlane.f32.xlu0 %v601
  %v736 = vpop.xlane.xlu0 %735
  %737 = vadd.xlane.f32.xlu0 %v602
  %v738 = vpop.xlane.xlu0 %737
  %739 = vadd.xlane.f32.xlu0 %v603
  %v740 = vpop.xlane.xlu0 %739
  %741 = vadd.xlane.f32.xlu0 %v604
  %v742 = vpop.xlane.xlu0 %741
  %743 = vadd.xlane.f32.xlu0 %v605
  %v744 = vpop.xlane.xlu0 %743
  %745 = vadd.xlane.f32.xlu0 %v606
  %v746 = vpop.xlane.xlu0 %745
  %747 = vadd.xlane.f32.xlu0 %v607
  %v748 = vpop.xlane.xlu0 %747
  %749 = vadd.xlane.f32.xlu0 %v608
  %v750 = vpop.xlane.xlu0 %749
  %751 = vadd.xlane.f32.xlu0 %v609
  %v752 = vpop.xlane.xlu0 %751
  %753 = vadd.xlane.f32.xlu0 %v610
  %v754 = vpop.xlane.xlu0 %753
  %755 = vadd.xlane.f32.xlu0 %v611
  %v756 = vpop.xlane.xlu0 %755
  %757 = vadd.xlane.f32.xlu0 %v612
  %v758 = vpop.xlane.xlu0 %757
  %759 = vadd.xlane.f32.xlu0 %v613
  %v760 = vpop.xlane.xlu0 %759
  %761 = vadd.xlane.f32.xlu0 %v614
  %v762 = vpop.xlane.xlu0 %761
  %763 = vadd.xlane.f32.xlu0 %v615
  %v764 = vpop.xlane.xlu0 %763
  %765 = vadd.xlane.f32.xlu0 %v616
  %v766 = vpop.xlane.xlu0 %765
  %767 = vadd.xlane.f32.xlu0 %v617
  %v768 = vpop.xlane.xlu0 %767
  %769 = vadd.xlane.f32.xlu0 %v618
  %v770 = vpop.xlane.xlu0 %769
  %771 = vadd.xlane.f32.xlu0 %v619
  %v772 = vpop.xlane.xlu0 %771
  %773 = vadd.xlane.f32.xlu0 %v620
  %v774 = vpop.xlane.xlu0 %773
  %775 = vadd.xlane.f32.xlu0 %v621
  %v776 = vpop.xlane.xlu0 %775
  %777 = vadd.xlane.f32.xlu0 %v622
  %v778 = vpop.xlane.xlu0 %777
  %779 = vadd.xlane.f32.xlu0 %v623
  %v780 = vpop.xlane.xlu0 %779
  %781 = vadd.xlane.f32.xlu0 %v624
  %v782 = vpop.xlane.xlu0 %781
  %783 = vadd.xlane.f32.xlu0 %v625
  %v784 = vpop.xlane.xlu0 %783
  %785 = vadd.xlane.f32.xlu0 %v626
  %v786 = vpop.xlane.xlu0 %785
  %787 = vadd.xlane.f32.xlu0 %v627
  %v788 = vpop.xlane.xlu0 %787
  %789 = vadd.xlane.f32.xlu0 %v628
  %v790 = vpop.xlane.xlu0 %789
  %791 = vadd.xlane.f32.xlu0 %v629
  %v792 = vpop.xlane.xlu0 %791
  %793 = vadd.xlane.f32.xlu0 %v630
  %v794 = vpop.xlane.xlu0 %793
  %795 = vadd.xlane.f32.xlu0 %v631
  %v796 = vpop.xlane.xlu0 %795
  %797 = vadd.xlane.f32.xlu0 %v632
  %v798 = vpop.xlane.xlu0 %797
  %799 = vadd.xlane.f32.xlu0 %v633
  %v800 = vpop.xlane.xlu0 %799
  %801 = vadd.xlane.f32.xlu0 %v634
  %v802 = vpop.xlane.xlu0 %801
  %803 = vadd.xlane.f32.xlu0 %v635
  %v804 = vpop.xlane.xlu0 %803
  %805 = vadd.xlane.f32.xlu0 %v636
  %v806 = vpop.xlane.xlu0 %805
  %807 = vadd.xlane.f32.xlu0 %v637
  %v808 = vpop.xlane.xlu0 %807
  %809 = vadd.xlane.f32.xlu0 %v638
  %v810 = vpop.xlane.xlu0 %809
  %811 = vadd.xlane.f32.xlu0 %v639
  %v812 = vpop.xlane.xlu0 %811
  %813 = vadd.xlane.f32.xlu0 %v640
  %v814 = vpop.xlane.xlu0 %813
  %815 = vadd.xlane.f32.xlu0 %v641
  %v816 = vpop.xlane.xlu0 %815
  %817 = vadd.xlane.f32.xlu0 %v642
  %v818 = vpop.xlane.xlu0 %817
  %819 = vadd.xlane.f32.xlu0 %v643
  %v820 = vpop.xlane.xlu0 %819
  %821 = vadd.xlane.f32.xlu0 %v644
  %v822 = vpop.xlane.xlu0 %821
  %823 = vadd.xlane.f32.xlu0 %v645
  %v824 = vpop.xlane.xlu0 %823
  %825 = vadd.xlane.f32.xlu0 %v646
  %v826 = vpop.xlane.xlu0 %825
  %827 = vadd.xlane.f32.xlu0 %v647
  %v828 = vpop.xlane.xlu0 %827
  %829 = vadd.xlane.f32.xlu0 %v648
  %v830 = vpop.xlane.xlu0 %829
  %831 = vadd.xlane.f32.xlu0 %v649
  %v832 = vpop.xlane.xlu0 %831
  %833 = vadd.xlane.f32.xlu0 %v650
  %v834 = vpop.xlane.xlu0 %833
  %835 = vadd.xlane.f32.xlu0 %v651
  %v836 = vpop.xlane.xlu0 %835
  %837 = vadd.xlane.f32.xlu0 %v652
  %v838 = vpop.xlane.xlu0 %837
  %839 = vadd.xlane.f32.xlu0 %v653
  %v840 = vpop.xlane.xlu0 %839
  %841 = vadd.xlane.f32.xlu0 %v654
  %v842 = vpop.xlane.xlu0 %841
  %843 = vadd.xlane.f32.xlu0 %v655
  %v844 = vpop.xlane.xlu0 %843
  %845 = vadd.xlane.f32.xlu0 %v656
  %v846 = vpop.xlane.xlu0 %845
  %847 = vadd.xlane.f32.xlu0 %v657
  %v848 = vpop.xlane.xlu0 %847
  %849 = vadd.xlane.f32.xlu0 %v658
  %v850 = vpop.xlane.xlu0 %849
  %851 = vadd.xlane.f32.xlu0 %v659
  %v852 = vpop.xlane.xlu0 %851
  %853 = vadd.xlane.f32.xlu0 %v660
  %v854 = vpop.xlane.xlu0 %853
  %855 = vadd.xlane.f32.xlu0 %v661
  %v856 = vpop.xlane.xlu0 %855
  %857 = vadd.xlane.f32.xlu0 %v662
  %v858 = vpop.xlane.xlu0 %857
  %859 = vadd.xlane.f32.xlu0 %v663
  %v860 = vpop.xlane.xlu0 %859
  %861 = vadd.xlane.f32.xlu0 %v664
  %v862 = vpop.xlane.xlu0 %861
  %863 = vadd.xlane.f32.xlu0 %v665
  %v864 = vpop.xlane.xlu0 %863
  %865 = vadd.xlane.f32.xlu0 %v666
  %v866 = vpop.xlane.xlu0 %865
  %867 = vadd.xlane.f32.xlu0 %v667
  %v868 = vpop.xlane.xlu0 %867
  %869 = vadd.xlane.f32.xlu0 %v668
  %v870 = vpop.xlane.xlu0 %869
  %871 = vadd.xlane.f32.xlu0 %v669
  %v872 = vpop.xlane.xlu0 %871
  %873 = vadd.xlane.f32.xlu0 %v670
  %v874 = vpop.xlane.xlu0 %873
  %875 = vadd.xlane.f32.xlu0 %v671
  %v876 = vpop.xlane.xlu0 %875
  %877 = vadd.xlane.f32.xlu0 %v672
  %v878 = vpop.xlane.xlu0 %877
  %879 = vadd.xlane.f32.xlu0 %v673
  %v880 = vpop.xlane.xlu0 %879
  %881 = vadd.xlane.f32.xlu0 %v674
  %v882 = vpop.xlane.xlu0 %881
  %883 = vadd.xlane.f32.xlu0 %v675
  %v884 = vpop.xlane.xlu0 %883
  %885 = vadd.xlane.f32.xlu0 %v676
  %v886 = vpop.xlane.xlu0 %885
  %887 = vadd.xlane.f32.xlu0 %v677
  %v888 = vpop.xlane.xlu0 %887
  %889 = vadd.xlane.f32.xlu0 %v678
  %v890 = vpop.xlane.xlu0 %889
  %891 = vadd.xlane.f32.xlu0 %v679
  %v892 = vpop.xlane.xlu0 %891
  %893 = vadd.xlane.f32.xlu0 %v680
  %v894 = vpop.xlane.xlu0 %893
  %895 = vadd.xlane.f32.xlu0 %v681
  %v896 = vpop.xlane.xlu0 %895
  %897 = vadd.xlane.f32.xlu0 %v682
  %v898 = vpop.xlane.xlu0 %897
  %899 = vadd.xlane.f32.xlu0 %v683
  %v900 = vpop.xlane.xlu0 %899
  %901 = vadd.xlane.f32.xlu0 %v684
  %v902 = vpop.xlane.xlu0 %901
  %903 = vadd.xlane.f32.xlu0 %v685
  %v904 = vpop.xlane.xlu0 %903
  %905 = vadd.xlane.f32.xlu0 %v686
  %v906 = vpop.xlane.xlu0 %905
  %907 = vadd.xlane.f32.xlu0 %v687
  %v908 = vpop.xlane.xlu0 %907
  %909 = vadd.xlane.f32.xlu0 %v688
  %v910 = vpop.xlane.xlu0 %909
  %911 = vadd.xlane.f32.xlu0 %v689
  %v912 = vpop.xlane.xlu0 %911
  %913 = vadd.xlane.f32.xlu0 %v690
  %v914 = vpop.xlane.xlu0 %913
  %915 = vadd.xlane.f32.xlu0 %v691
  %v916 = vpop.xlane.xlu0 %915
  %917 = vadd.xlane.f32.xlu0 %v692
  %v918 = vpop.xlane.xlu0 %917
  %919 = vadd.xlane.f32.xlu0 %v693
  %v920 = vpop.xlane.xlu0 %919
  %921 = vadd.xlane.f32.xlu0 %v694
  %v922 = vpop.xlane.xlu0 %921
  %923 = vadd.xlane.f32.xlu0 %v695
  %v924 = vpop.xlane.xlu0 %923
  %925 = vadd.xlane.f32.xlu0 %v696
  %v926 = vpop.xlane.xlu0 %925
  %927 = vadd.xlane.f32.xlu0 %v697
  %v928 = vpop.xlane.xlu0 %927
  %929 = vadd.xlane.f32.xlu0 %v698
  %v930 = vpop.xlane.xlu0 %929
  %931 = vadd.xlane.f32.xlu0 %v699
  %v932 = vpop.xlane.xlu0 %931
  %933 = vadd.xlane.f32.xlu0 %v700
  %v934 = vpop.xlane.xlu0 %933
  %935 = vadd.xlane.f32.xlu0 %v701
  %v936 = vpop.xlane.xlu0 %935
  %937 = vadd.xlane.f32.xlu0 %v702
  %v938 = vpop.xlane.xlu0 %937
  %939 = vadd.xlane.f32.xlu0 %v703
  %v940 = vpop.xlane.xlu0 %939
  %941 = vadd.xlane.f32.xlu0 %v704
  %v942 = vpop.xlane.xlu0 %941
  %943 = vadd.xlane.f32.xlu0 %v705
  %v944 = vpop.xlane.xlu0 %943
  %945 = vadd.xlane.f32.xlu0 %v706
  %v946 = vpop.xlane.xlu0 %945
  %947 = vadd.xlane.f32.xlu0 %v707
  %v948 = vpop.xlane.xlu0 %947
  %949 = vadd.xlane.f32.xlu0 %v708
  %v950 = vpop.xlane.xlu0 %949
  %951 = vadd.xlane.f32.xlu0 %v709
  %v952 = vpop.xlane.xlu0 %951
  %953 = vadd.xlane.f32.xlu0 %v710
  %v954 = vpop.xlane.xlu0 %953
  %955 = vadd.xlane.f32.xlu0 %v711
  %v956 = vpop.xlane.xlu0 %955
  %957 = vadd.xlane.f32.xlu0 %v712
  %v958 = vpop.xlane.xlu0 %957
  %959 = vadd.xlane.f32.xlu0 %v713
  %v960 = vpop.xlane.xlu0 %959
  %961 = vadd.xlane.f32.xlu0 %v714
  %v962 = vpop.xlane.xlu0 %961
  %963 = vadd.xlane.f32.xlu0 %v715
  %v964 = vpop.xlane.xlu0 %963
  %965 = vadd.xlane.f32.xlu0 %v716
  %v966 = vpop.xlane.xlu0 %965
  %967 = vadd.xlane.f32.xlu0 %v717
  %v968 = vpop.xlane.xlu0 %967
  %969 = vadd.xlane.f32.xlu0 %v718
  %v970 = vpop.xlane.xlu0 %969
  %971 = vadd.xlane.f32.xlu0 %v719
  %v972 = vpop.xlane.xlu0 %971
  %973 = vadd.xlane.f32.xlu0 %v720
  %v974 = vpop.xlane.xlu0 %973
  %975 = vadd.xlane.f32.xlu0 %v721
  %v976 = vpop.xlane.xlu0 %975
  %977 = vadd.xlane.f32.xlu0 %v722
  %v978 = vpop.xlane.xlu0 %977
  %s979 = sld [smem:[#allocation3]]
  %v980 = vstv %s979
  %v981 = vadd.f32 %v724, %v980
  %v982 = vadd.f32 %v726, %v980
  %v983 = vadd.f32 %v728, %v980
  %v984 = vadd.f32 %v730, %v980
  %v985 = vadd.f32 %v732, %v980
  %v986 = vadd.f32 %v734, %v980
  %v987 = vadd.f32 %v736, %v980
  %v988 = vadd.f32 %v738, %v980
  %v989 = vadd.f32 %v740, %v980
  %v990 = vadd.f32 %v742, %v980
  %v991 = vadd.f32 %v744, %v980
  %v992 = vadd.f32 %v746, %v980
  %v993 = vadd.f32 %v748, %v980
  %v994 = vadd.f32 %v750, %v980
  %v995 = vadd.f32 %v752, %v980
  %v996 = vadd.f32 %v754, %v980
  %v997 = vadd.f32 %v756, %v980
  %v998 = vadd.f32 %v758, %v980
  %v999 = vadd.f32 %v760, %v980
  %v1000 = vadd.f32 %v762, %v980
  %v1001 = vadd.f32 %v764, %v980
  %v1002 = vadd.f32 %v766, %v980
  %v1003 = vadd.f32 %v768, %v980
  %v1004 = vadd.f32 %v770, %v980
  %v1005 = vadd.f32 %v772, %v980
  %v1006 = vadd.f32 %v774, %v980
  %v1007 = vadd.f32 %v776, %v980
  %v1008 = vadd.f32 %v778, %v980
  %v1009 = vadd.f32 %v780, %v980
  %v1010 = vadd.f32 %v782, %v980
  %v1011 = vadd.f32 %v784, %v980
  %v1012 = vadd.f32 %v786, %v980
  %v1013 = vadd.f32 %v788, %v980
  %v1014 = vadd.f32 %v790, %v980
  %v1015 = vadd.f32 %v792, %v980
  %v1016 = vadd.f32 %v794, %v980
  %v1017 = vadd.f32 %v796, %v980
  %v1018 = vadd.f32 %v798, %v980
  %v1019 = vadd.f32 %v800, %v980
  %v1020 = vadd.f32 %v802, %v980
  %v1021 = vadd.f32 %v804, %v980
  %v1022 = vadd.f32 %v806, %v980
  %v1023 = vadd.f32 %v808, %v980
  %v1024 = vadd.f32 %v810, %v980
  %v1025 = vadd.f32 %v812, %v980
  %v1026 = vadd.f32 %v814, %v980
  %v1027 = vadd.f32 %v816, %v980
  %v1028 = vadd.f32 %v818, %v980
  %v1029 = vadd.f32 %v820, %v980
  %v1030 = vadd.f32 %v822, %v980
  %v1031 = vadd.f32 %v824, %v980
  %v1032 = vadd.f32 %v826, %v980
  %v1033 = vadd.f32 %v828, %v980
  %v1034 = vadd.f32 %v830, %v980
  %v1035 = vadd.f32 %v832, %v980
  %v1036 = vadd.f32 %v834, %v980
  %v1037 = vadd.f32 %v836, %v980
  %v1038 = vadd.f32 %v838, %v980
  %v1039 = vadd.f32 %v840, %v980
  %v1040 = vadd.f32 %v842, %v980
  %v1041 = vadd.f32 %v844, %v980
  %v1042 = vadd.f32 %v846, %v980
  %v1043 = vadd.f32 %v848, %v980
  %v1044 = vadd.f32 %v850, %v980
  %v1045 = vadd.f32 %v852, %v980
  %v1046 = vadd.f32 %v854, %v980
  %v1047 = vadd.f32 %v856, %v980
  %v1048 = vadd.f32 %v858, %v980
  %v1049 = vadd.f32 %v860, %v980
  %v1050 = vadd.f32 %v862, %v980
  %v1051 = vadd.f32 %v864, %v980
  %v1052 = vadd.f32 %v866, %v980
  %v1053 = vadd.f32 %v868, %v980
  %v1054 = vadd.f32 %v870, %v980
  %v1055 = vadd.f32 %v872, %v980
  %v1056 = vadd.f32 %v874, %v980
  %v1057 = vadd.f32 %v876, %v980
  %v1058 = vadd.f32 %v878, %v980
  %v1059 = vadd.f32 %v880, %v980
  %v1060 = vadd.f32 %v882, %v980
  %v1061 = vadd.f32 %v884, %v980
  %v1062 = vadd.f32 %v886, %v980
  %v1063 = vadd.f32 %v888, %v980
  %v1064 = vadd.f32 %v890, %v980
  %v1065 = vadd.f32 %v892, %v980
  %v1066 = vadd.f32 %v894, %v980
  %v1067 = vadd.f32 %v896, %v980
  %v1068 = vadd.f32 %v898, %v980
  %v1069 = vadd.f32 %v900, %v980
  %v1070 = vadd.f32 %v902, %v980
  %v1071 = vadd.f32 %v904, %v980
  %v1072 = vadd.f32 %v906, %v980
  %v1073 = vadd.f32 %v908, %v980
  %v1074 = vadd.f32 %v910, %v980
  %v1075 = vadd.f32 %v912, %v980
  %v1076 = vadd.f32 %v914, %v980
  %v1077 = vadd.f32 %v916, %v980
  %v1078 = vadd.f32 %v918, %v980
  %v1079 = vadd.f32 %v920, %v980
  %v1080 = vadd.f32 %v922, %v980
  %v1081 = vadd.f32 %v924, %v980
  %v1082 = vadd.f32 %v926, %v980
  %v1083 = vadd.f32 %v928, %v980
  %v1084 = vadd.f32 %v930, %v980
  %v1085 = vadd.f32 %v932, %v980
  %v1086 = vadd.f32 %v934, %v980
  %v1087 = vadd.f32 %v936, %v980
  %v1088 = vadd.f32 %v938, %v980
  %v1089 = vadd.f32 %v940, %v980
  %v1090 = vadd.f32 %v942, %v980
  %v1091 = vadd.f32 %v944, %v980
  %v1092 = vadd.f32 %v946, %v980
  %v1093 = vadd.f32 %v948, %v980
  %v1094 = vadd.f32 %v950, %v980
  %v1095 = vadd.f32 %v952, %v980
  %v1096 = vadd.f32 %v954, %v980
  %v1097 = vadd.f32 %v956, %v980
  %v1098 = vadd.f32 %v958, %v980
  %v1099 = vadd.f32 %v960, %v980
  %v1100 = vadd.f32 %v962, %v980
  %v1101 = vadd.f32 %v964, %v980
  %v1102 = vadd.f32 %v966, %v980
  %v1103 = vadd.f32 %v968, %v980
  %v1104 = vadd.f32 %v970, %v980
  %v1105 = vadd.f32 %v972, %v980
  %v1106 = vadd.f32 %v974, %v980
  %v1107 = vadd.f32 %v976, %v980
  %v1108 = vadd.f32 %v978, %v980
  %v1237 = vlaneseq
  %v1238 = vand.u32 %v1237, 127
  %v1239 = vlaneseq
  %v1240 = vshrl.u32 %v1239, 7
  %v1241 = vsub.s32 %v1238, %v1240
  %v1242 = vrot.slane %v981, %v1241
  %v1243 = vadd.s32 %v1238, 4294967288
  %v1244 = vlaneseq
  %v1245 = vshrl.u32 %v1244, 7
  %v1246 = vsub.s32 %v1243, %v1245
  %v1247 = vrot.slane %v982, %v1246
  %vm1248 = vcmask 130112
  %v1249 = vsel %vm1248, %v1247, %v1242
  %v1250 = vadd.s32 %v1238, 4294967280
  %v1251 = vlaneseq
  %v1252 = vshrl.u32 %v1251, 7
  %v1253 = vsub.s32 %v1250, %v1252
  %v1254 = vrot.slane %v983, %v1253
  %vm1255 = vcmask 195712
  %v1256 = vsel %vm1255, %v1254, %v1249
  %v1257 = vadd.s32 %v1238, 4294967272
  %v1258 = vlaneseq
  %v1259 = vshrl.u32 %v1258, 7
  %v1260 = vsub.s32 %v1257, %v1259
  %v1261 = vrot.slane %v984, %v1260
  %vm1262 = vcmask 261312
  %v1263 = vsel %vm1262, %v1261, %v1256
  %v1264 = vadd.s32 %v1238, 4294967264
  %v1265 = vlaneseq
  %v1266 = vshrl.u32 %v1265, 7
  %v1267 = vsub.s32 %v1264, %v1266
  %v1268 = vrot.slane %v985, %v1267
  %vm1269 = vcmask 326912
  %v1270 = vsel %vm1269, %v1268, %v1263
  %v1271 = vadd.s32 %v1238, 4294967256
  %v1272 = vlaneseq
  %v1273 = vshrl.u32 %v1272, 7
  %v1274 = vsub.s32 %v1271, %v1273
  %v1275 = vrot.slane %v986, %v1274
  %vm1276 = vcmask 392512
  %v1277 = vsel %vm1276, %v1275, %v1270
  %v1278 = vadd.s32 %v1238, 4294967248
  %v1279 = vlaneseq
  %v1280 = vshrl.u32 %v1279, 7
  %v1281 = vsub.s32 %v1278, %v1280
  %v1282 = vrot.slane %v987, %v1281
  %vm1283 = vcmask 458112
  %v1284 = vsel %vm1283, %v1282, %v1277
  %v1285 = vadd.s32 %v1238, 4294967240
  %v1286 = vlaneseq
  %v1287 = vshrl.u32 %v1286, 7
  %v1288 = vsub.s32 %v1285, %v1287
  %v1289 = vrot.slane %v988, %v1288
  %vm1290 = vcmask 523712
  %v1291 = vsel %vm1290, %v1289, %v1284
  %v1292 = vadd.s32 %v1238, 4294967232
  %v1293 = vlaneseq
  %v1294 = vshrl.u32 %v1293, 7
  %v1295 = vsub.s32 %v1292, %v1294
  %v1296 = vrot.slane %v989, %v1295
  %vm1297 = vcmask 589312
  %v1298 = vsel %vm1297, %v1296, %v1291
  %v1299 = vadd.s32 %v1238, 4294967224
  %v1300 = vlaneseq
  %v1301 = vshrl.u32 %v1300, 7
  %v1302 = vsub.s32 %v1299, %v1301
  %v1303 = vrot.slane %v990, %v1302
  %vm1304 = vcmask 654912
  %v1305 = vsel %vm1304, %v1303, %v1298
  %v1306 = vadd.s32 %v1238, 4294967216
  %v1307 = vlaneseq
  %v1308 = vshrl.u32 %v1307, 7
  %v1309 = vsub.s32 %v1306, %v1308
  %v1310 = vrot.slane %v991, %v1309
  %vm1311 = vcmask 720512
  %v1312 = vsel %vm1311, %v1310, %v1305
  %v1313 = vadd.s32 %v1238, 4294967208
  %v1314 = vlaneseq
  %v1315 = vshrl.u32 %v1314, 7
  %v1316 = vsub.s32 %v1313, %v1315
  %v1317 = vrot.slane %v992, %v1316
  %vm1318 = vcmask 786112
  %v1319 = vsel %vm1318, %v1317, %v1312
  %v1320 = vadd.s32 %v1238, 4294967200
  %v1321 = vlaneseq
  %v1322 = vshrl.u32 %v1321, 7
  %v1323 = vsub.s32 %v1320, %v1322
  %v1324 = vrot.slane %v993, %v1323
  %vm1325 = vcmask 851712
  %v1326 = vsel %vm1325, %v1324, %v1319
  %v1327 = vadd.s32 %v1238, 4294967192
  %v1328 = vlaneseq
  %v1329 = vshrl.u32 %v1328, 7
  %v1330 = vsub.s32 %v1327, %v1329
  %v1331 = vrot.slane %v994, %v1330
  %vm1332 = vcmask 917312
  %v1333 = vsel %vm1332, %v1331, %v1326
  %v1334 = vadd.s32 %v1238, 4294967184
  %v1335 = vlaneseq
  %v1336 = vshrl.u32 %v1335, 7
  %v1337 = vsub.s32 %v1334, %v1336
  %v1338 = vrot.slane %v995, %v1337
  %vm1339 = vcmask 982912
  %v1340 = vsel %vm1339, %v1338, %v1333
  %v1341 = vadd.s32 %v1238, 4294967176
  %v1342 = vlaneseq
  %v1343 = vshrl.u32 %v1342, 7
  %v1344 = vsub.s32 %v1341, %v1343
  %v1345 = vrot.slane %v996, %v1344
  %vm1346 = vcmask 1048512
  %v1347 = vsel %vm1346, %v1345, %v1340
  %v1348 = vlaneseq
  %v1349 = vshrl.u32 %v1348, 7
  %v1350 = vsub.s32 %v1238, %v1349
  %v1351 = vrot.slane %v997, %v1350
  %v1352 = vlaneseq
  %v1353 = vshrl.u32 %v1352, 7
  %v1354 = vsub.s32 %v1243, %v1353
  %v1355 = vrot.slane %v998, %v1354
  %v1356 = vsel %vm1248, %v1355, %v1351
  %v1357 = vlaneseq
  %v1358 = vshrl.u32 %v1357, 7
  %v1359 = vsub.s32 %v1250, %v1358
  %v1360 = vrot.slane %v999, %v1359
  %v1361 = vsel %vm1255, %v1360, %v1356
  %v1362 = vlaneseq
  %v1363 = vshrl.u32 %v1362, 7
  %v1364 = vsub.s32 %v1257, %v1363
  %v1365 = vrot.slane %v1000, %v1364
  %v1366 = vsel %vm1262, %v1365, %v1361
  %v1367 = vlaneseq
  %v1368 = vshrl.u32 %v1367, 7
  %v1369 = vsub.s32 %v1264, %v1368
  %v1370 = vrot.slane %v1001, %v1369
  %v1371 = vsel %vm1269, %v1370, %v1366
  %v1372 = vlaneseq
  %v1373 = vshrl.u32 %v1372, 7
  %v1374 = vsub.s32 %v1271, %v1373
  %v1375 = vrot.slane %v1002, %v1374
  %v1376 = vsel %vm1276, %v1375, %v1371
  %v1377 = vlaneseq
  %v1378 = vshrl.u32 %v1377, 7
  %v1379 = vsub.s32 %v1278, %v1378
  %v1380 = vrot.slane %v1003, %v1379
  %v1381 = vsel %vm1283, %v1380, %v1376
  %v1382 = vlaneseq
  %v1383 = vshrl.u32 %v1382, 7
  %v1384 = vsub.s32 %v1285, %v1383
  %v1385 = vrot.slane %v1004, %v1384
  %v1386 = vsel %vm1290, %v1385, %v1381
  %v1387 = vlaneseq
  %v1388 = vshrl.u32 %v1387, 7
  %v1389 = vsub.s32 %v1292, %v1388
  %v1390 = vrot.slane %v1005, %v1389
  %v1391 = vsel %vm1297, %v1390, %v1386
  %v1392 = vlaneseq
  %v1393 = vshrl.u32 %v1392, 7
  %v1394 = vsub.s32 %v1299, %v1393
  %v1395 = vrot.slane %v1006, %v1394
  %v1396 = vsel %vm1304, %v1395, %v1391
  %v1397 = vlaneseq
  %v1398 = vshrl.u32 %v1397, 7
  %v1399 = vsub.s32 %v1306, %v1398
  %v1400 = vrot.slane %v1007, %v1399
  %v1401 = vsel %vm1311, %v1400, %v1396
  %v1402 = vlaneseq
  %v1403 = vshrl.u32 %v1402, 7
  %v1404 = vsub.s32 %v1313, %v1403
  %v1405 = vrot.slane %v1008, %v1404
  %v1406 = vsel %vm1318, %v1405, %v1401
  %v1407 = vlaneseq
  %v1408 = vshrl.u32 %v1407, 7
  %v1409 = vsub.s32 %v1320, %v1408
  %v1410 = vrot.slane %v1009, %v1409
  %v1411 = vsel %vm1325, %v1410, %v1406
  %v1412 = vlaneseq
  %v1413 = vshrl.u32 %v1412, 7
  %v1414 = vsub.s32 %v1327, %v1413
  %v1415 = vrot.slane %v1010, %v1414
  %v1416 = vsel %vm1332, %v1415, %v1411
  %v1417 = vlaneseq
  %v1418 = vshrl.u32 %v1417, 7
  %v1419 = vsub.s32 %v1334, %v1418
  %v1420 = vrot.slane %v1011, %v1419
  %v1421 = vsel %vm1339, %v1420, %v1416
  %v1422 = vlaneseq
  %v1423 = vshrl.u32 %v1422, 7
  %v1424 = vsub.s32 %v1341, %v1423
  %v1425 = vrot.slane %v1012, %v1424
  %v1426 = vsel %vm1346, %v1425, %v1421
  %v1427 = vlaneseq
  %v1428 = vshrl.u32 %v1427, 7
  %v1429 = vsub.s32 %v1238, %v1428
  %v1430 = vrot.slane %v1013, %v1429
  %v1431 = vlaneseq
  %v1432 = vshrl.u32 %v1431, 7
  %v1433 = vsub.s32 %v1243, %v1432
  %v1434 = vrot.slane %v1014, %v1433
  %v1435 = vsel %vm1248, %v1434, %v1430
  %v1436 = vlaneseq
  %v1437 = vshrl.u32 %v1436, 7
  %v1438 = vsub.s32 %v1250, %v1437
  %v1439 = vrot.slane %v1015, %v1438
  %v1440 = vsel %vm1255, %v1439, %v1435
  %v1441 = vlaneseq
  %v1442 = vshrl.u32 %v1441, 7
  %v1443 = vsub.s32 %v1257, %v1442
  %v1444 = vrot.slane %v1016, %v1443
  %v1445 = vsel %vm1262, %v1444, %v1440
  %v1446 = vlaneseq
  %v1447 = vshrl.u32 %v1446, 7
  %v1448 = vsub.s32 %v1264, %v1447
  %v1449 = vrot.slane %v1017, %v1448
  %v1450 = vsel %vm1269, %v1449, %v1445
  %v1451 = vlaneseq
  %v1452 = vshrl.u32 %v1451, 7
  %v1453 = vsub.s32 %v1271, %v1452
  %v1454 = vrot.slane %v1018, %v1453
  %v1455 = vsel %vm1276, %v1454, %v1450
  %v1456 = vlaneseq
  %v1457 = vshrl.u32 %v1456, 7
  %v1458 = vsub.s32 %v1278, %v1457
  %v1459 = vrot.slane %v1019, %v1458
  %v1460 = vsel %vm1283, %v1459, %v1455
  %v1461 = vlaneseq
  %v1462 = vshrl.u32 %v1461, 7
  %v1463 = vsub.s32 %v1285, %v1462
  %v1464 = vrot.slane %v1020, %v1463
  %v1465 = vsel %vm1290, %v1464, %v1460
  %v1466 = vlaneseq
  %v1467 = vshrl.u32 %v1466, 7
  %v1468 = vsub.s32 %v1292, %v1467
  %v1469 = vrot.slane %v1021, %v1468
  %v1470 = vsel %vm1297, %v1469, %v1465
  %v1471 = vlaneseq
  %v1472 = vshrl.u32 %v1471, 7
  %v1473 = vsub.s32 %v1299, %v1472
  %v1474 = vrot.slane %v1022, %v1473
  %v1475 = vsel %vm1304, %v1474, %v1470
  %v1476 = vlaneseq
  %v1477 = vshrl.u32 %v1476, 7
  %v1478 = vsub.s32 %v1306, %v1477
  %v1479 = vrot.slane %v1023, %v1478
  %v1480 = vsel %vm1311, %v1479, %v1475
  %v1481 = vlaneseq
  %v1482 = vshrl.u32 %v1481, 7
  %v1483 = vsub.s32 %v1313, %v1482
  %v1484 = vrot.slane %v1024, %v1483
  %v1485 = vsel %vm1318, %v1484, %v1480
  %v1486 = vlaneseq
  %v1487 = vshrl.u32 %v1486, 7
  %v1488 = vsub.s32 %v1320, %v1487
  %v1489 = vrot.slane %v1025, %v1488
  %v1490 = vsel %vm1325, %v1489, %v1485
  %v1491 = vlaneseq
  %v1492 = vshrl.u32 %v1491, 7
  %v1493 = vsub.s32 %v1327, %v1492
  %v1494 = vrot.slane %v1026, %v1493
  %v1495 = vsel %vm1332, %v1494, %v1490
  %v1496 = vlaneseq
  %v1497 = vshrl.u32 %v1496, 7
  %v1498 = vsub.s32 %v1334, %v1497
  %v1499 = vrot.slane %v1027, %v1498
  %v1500 = vsel %vm1339, %v1499, %v1495
  %v1501 = vlaneseq
  %v1502 = vshrl.u32 %v1501, 7
  %v1503 = vsub.s32 %v1341, %v1502
  %v1504 = vrot.slane %v1028, %v1503
  %v1505 = vsel %vm1346, %v1504, %v1500
  %v1506 = vlaneseq
  %v1507 = vshrl.u32 %v1506, 7
  %v1508 = vsub.s32 %v1238, %v1507
  %v1509 = vrot.slane %v1029, %v1508
  %v1510 = vlaneseq
  %v1511 = vshrl.u32 %v1510, 7
  %v1512 = vsub.s32 %v1243, %v1511
  %v1513 = vrot.slane %v1030, %v1512
  %v1514 = vsel %vm1248, %v1513, %v1509
  %v1515 = vlaneseq
  %v1516 = vshrl.u32 %v1515, 7
  %v1517 = vsub.s32 %v1250, %v1516
  %v1518 = vrot.slane %v1031, %v1517
  %v1519 = vsel %vm1255, %v1518, %v1514
  %v1520 = vlaneseq
  %v1521 = vshrl.u32 %v1520, 7
  %v1522 = vsub.s32 %v1257, %v1521
  %v1523 = vrot.slane %v1032, %v1522
  %v1524 = vsel %vm1262, %v1523, %v1519
  %v1525 = vlaneseq
  %v1526 = vshrl.u32 %v1525, 7
  %v1527 = vsub.s32 %v1264, %v1526
  %v1528 = vrot.slane %v1033, %v1527
  %v1529 = vsel %vm1269, %v1528, %v1524
  %v1530 = vlaneseq
  %v1531 = vshrl.u32 %v1530, 7
  %v1532 = vsub.s32 %v1271, %v1531
  %v1533 = vrot.slane %v1034, %v1532
  %v1534 = vsel %vm1276, %v1533, %v1529
  %v1535 = vlaneseq
  %v1536 = vshrl.u32 %v1535, 7
  %v1537 = vsub.s32 %v1278, %v1536
  %v1538 = vrot.slane %v1035, %v1537
  %v1539 = vsel %vm1283, %v1538, %v1534
  %v1540 = vlaneseq
  %v1541 = vshrl.u32 %v1540, 7
  %v1542 = vsub.s32 %v1285, %v1541
  %v1543 = vrot.slane %v1036, %v1542
  %v1544 = vsel %vm1290, %v1543, %v1539
  %v1545 = vlaneseq
  %v1546 = vshrl.u32 %v1545, 7
  %v1547 = vsub.s32 %v1292, %v1546
  %v1548 = vrot.slane %v1037, %v1547
  %v1549 = vsel %vm1297, %v1548, %v1544
  %v1550 = vlaneseq
  %v1551 = vshrl.u32 %v1550, 7
  %v1552 = vsub.s32 %v1299, %v1551
  %v1553 = vrot.slane %v1038, %v1552
  %v1554 = vsel %vm1304, %v1553, %v1549
  %v1555 = vlaneseq
  %v1556 = vshrl.u32 %v1555, 7
  %v1557 = vsub.s32 %v1306, %v1556
  %v1558 = vrot.slane %v1039, %v1557
  %v1559 = vsel %vm1311, %v1558, %v1554
  %v1560 = vlaneseq
  %v1561 = vshrl.u32 %v1560, 7
  %v1562 = vsub.s32 %v1313, %v1561
  %v1563 = vrot.slane %v1040, %v1562
  %v1564 = vsel %vm1318, %v1563, %v1559
  %v1565 = vlaneseq
  %v1566 = vshrl.u32 %v1565, 7
  %v1567 = vsub.s32 %v1320, %v1566
  %v1568 = vrot.slane %v1041, %v1567
  %v1569 = vsel %vm1325, %v1568, %v1564
  %v1570 = vlaneseq
  %v1571 = vshrl.u32 %v1570, 7
  %v1572 = vsub.s32 %v1327, %v1571
  %v1573 = vrot.slane %v1042, %v1572
  %v1574 = vsel %vm1332, %v1573, %v1569
  %v1575 = vlaneseq
  %v1576 = vshrl.u32 %v1575, 7
  %v1577 = vsub.s32 %v1334, %v1576
  %v1578 = vrot.slane %v1043, %v1577
  %v1579 = vsel %vm1339, %v1578, %v1574
  %v1580 = vlaneseq
  %v1581 = vshrl.u32 %v1580, 7
  %v1582 = vsub.s32 %v1341, %v1581
  %v1583 = vrot.slane %v1044, %v1582
  %v1584 = vsel %vm1346, %v1583, %v1579
  %v1585 = vlaneseq
  %v1586 = vshrl.u32 %v1585, 7
  %v1587 = vsub.s32 %v1238, %v1586
  %v1588 = vrot.slane %v1045, %v1587
  %v1589 = vlaneseq
  %v1590 = vshrl.u32 %v1589, 7
  %v1591 = vsub.s32 %v1243, %v1590
  %v1592 = vrot.slane %v1046, %v1591
  %v1593 = vsel %vm1248, %v1592, %v1588
  %v1594 = vlaneseq
  %v1595 = vshrl.u32 %v1594, 7
  %v1596 = vsub.s32 %v1250, %v1595
  %v1597 = vrot.slane %v1047, %v1596
  %v1598 = vsel %vm1255, %v1597, %v1593
  %v1599 = vlaneseq
  %v1600 = vshrl.u32 %v1599, 7
  %v1601 = vsub.s32 %v1257, %v1600
  %v1602 = vrot.slane %v1048, %v1601
  %v1603 = vsel %vm1262, %v1602, %v1598
  %v1604 = vlaneseq
  %v1605 = vshrl.u32 %v1604, 7
  %v1606 = vsub.s32 %v1264, %v1605
  %v1607 = vrot.slane %v1049, %v1606
  %v1608 = vsel %vm1269, %v1607, %v1603
  %v1609 = vlaneseq
  %v1610 = vshrl.u32 %v1609, 7
  %v1611 = vsub.s32 %v1271, %v1610
  %v1612 = vrot.slane %v1050, %v1611
  %v1613 = vsel %vm1276, %v1612, %v1608
  %v1614 = vlaneseq
  %v1615 = vshrl.u32 %v1614, 7
  %v1616 = vsub.s32 %v1278, %v1615
  %v1617 = vrot.slane %v1051, %v1616
  %v1618 = vsel %vm1283, %v1617, %v1613
  %v1619 = vlaneseq
  %v1620 = vshrl.u32 %v1619, 7
  %v1621 = vsub.s32 %v1285, %v1620
  %v1622 = vrot.slane %v1052, %v1621
  %v1623 = vsel %vm1290, %v1622, %v1618
  %v1624 = vlaneseq
  %v1625 = vshrl.u32 %v1624, 7
  %v1626 = vsub.s32 %v1292, %v1625
  %v1627 = vrot.slane %v1053, %v1626
  %v1628 = vsel %vm1297, %v1627, %v1623
  %v1629 = vlaneseq
  %v1630 = vshrl.u32 %v1629, 7
  %v1631 = vsub.s32 %v1299, %v1630
  %v1632 = vrot.slane %v1054, %v1631
  %v1633 = vsel %vm1304, %v1632, %v1628
  %v1634 = vlaneseq
  %v1635 = vshrl.u32 %v1634, 7
  %v1636 = vsub.s32 %v1306, %v1635
  %v1637 = vrot.slane %v1055, %v1636
  %v1638 = vsel %vm1311, %v1637, %v1633
  %v1639 = vlaneseq
  %v1640 = vshrl.u32 %v1639, 7
  %v1641 = vsub.s32 %v1313, %v1640
  %v1642 = vrot.slane %v1056, %v1641
  %v1643 = vsel %vm1318, %v1642, %v1638
  %v1644 = vlaneseq
  %v1645 = vshrl.u32 %v1644, 7
  %v1646 = vsub.s32 %v1320, %v1645
  %v1647 = vrot.slane %v1057, %v1646
  %v1648 = vsel %vm1325, %v1647, %v1643
  %v1649 = vlaneseq
  %v1650 = vshrl.u32 %v1649, 7
  %v1651 = vsub.s32 %v1327, %v1650
  %v1652 = vrot.slane %v1058, %v1651
  %v1653 = vsel %vm1332, %v1652, %v1648
  %v1654 = vlaneseq
  %v1655 = vshrl.u32 %v1654, 7
  %v1656 = vsub.s32 %v1334, %v1655
  %v1657 = vrot.slane %v1059, %v1656
  %v1658 = vsel %vm1339, %v1657, %v1653
  %v1659 = vlaneseq
  %v1660 = vshrl.u32 %v1659, 7
  %v1661 = vsub.s32 %v1341, %v1660
  %v1662 = vrot.slane %v1060, %v1661
  %v1663 = vsel %vm1346, %v1662, %v1658
  %v1664 = vlaneseq
  %v1665 = vshrl.u32 %v1664, 7
  %v1666 = vsub.s32 %v1238, %v1665
  %v1667 = vrot.slane %v1061, %v1666
  %v1668 = vlaneseq
  %v1669 = vshrl.u32 %v1668, 7
  %v1670 = vsub.s32 %v1243, %v1669
  %v1671 = vrot.slane %v1062, %v1670
  %v1672 = vsel %vm1248, %v1671, %v1667
  %v1673 = vlaneseq
  %v1674 = vshrl.u32 %v1673, 7
  %v1675 = vsub.s32 %v1250, %v1674
  %v1676 = vrot.slane %v1063, %v1675
  %v1677 = vsel %vm1255, %v1676, %v1672
  %v1678 = vlaneseq
  %v1679 = vshrl.u32 %v1678, 7
  %v1680 = vsub.s32 %v1257, %v1679
  %v1681 = vrot.slane %v1064, %v1680
  %v1682 = vsel %vm1262, %v1681, %v1677
  %v1683 = vlaneseq
  %v1684 = vshrl.u32 %v1683, 7
  %v1685 = vsub.s32 %v1264, %v1684
  %v1686 = vrot.slane %v1065, %v1685
  %v1687 = vsel %vm1269, %v1686, %v1682
  %v1688 = vlaneseq
  %v1689 = vshrl.u32 %v1688, 7
  %v1690 = vsub.s32 %v1271, %v1689
  %v1691 = vrot.slane %v1066, %v1690
  %v1692 = vsel %vm1276, %v1691, %v1687
  %v1693 = vlaneseq
  %v1694 = vshrl.u32 %v1693, 7
  %v1695 = vsub.s32 %v1278, %v1694
  %v1696 = vrot.slane %v1067, %v1695
  %v1697 = vsel %vm1283, %v1696, %v1692
  %v1698 = vlaneseq
  %v1699 = vshrl.u32 %v1698, 7
  %v1700 = vsub.s32 %v1285, %v1699
  %v1701 = vrot.slane %v1068, %v1700
  %v1702 = vsel %vm1290, %v1701, %v1697
  %v1703 = vlaneseq
  %v1704 = vshrl.u32 %v1703, 7
  %v1705 = vsub.s32 %v1292, %v1704
  %v1706 = vrot.slane %v1069, %v1705
  %v1707 = vsel %vm1297, %v1706, %v1702
  %v1708 = vlaneseq
  %v1709 = vshrl.u32 %v1708, 7
  %v1710 = vsub.s32 %v1299, %v1709
  %v1711 = vrot.slane %v1070, %v1710
  %v1712 = vsel %vm1304, %v1711, %v1707
  %v1713 = vlaneseq
  %v1714 = vshrl.u32 %v1713, 7
  %v1715 = vsub.s32 %v1306, %v1714
  %v1716 = vrot.slane %v1071, %v1715
  %v1717 = vsel %vm1311, %v1716, %v1712
  %v1718 = vlaneseq
  %v1719 = vshrl.u32 %v1718, 7
  %v1720 = vsub.s32 %v1313, %v1719
  %v1721 = vrot.slane %v1072, %v1720
  %v1722 = vsel %vm1318, %v1721, %v1717
  %v1723 = vlaneseq
  %v1724 = vshrl.u32 %v1723, 7
  %v1725 = vsub.s32 %v1320, %v1724
  %v1726 = vrot.slane %v1073, %v1725
  %v1727 = vsel %vm1325, %v1726, %v1722
  %v1728 = vlaneseq
  %v1729 = vshrl.u32 %v1728, 7
  %v1730 = vsub.s32 %v1327, %v1729
  %v1731 = vrot.slane %v1074, %v1730
  %v1732 = vsel %vm1332, %v1731, %v1727
  %v1733 = vlaneseq
  %v1734 = vshrl.u32 %v1733, 7
  %v1735 = vsub.s32 %v1334, %v1734
  %v1736 = vrot.slane %v1075, %v1735
  %v1737 = vsel %vm1339, %v1736, %v1732
  %v1738 = vlaneseq
  %v1739 = vshrl.u32 %v1738, 7
  %v1740 = vsub.s32 %v1341, %v1739
  %v1741 = vrot.slane %v1076, %v1740
  %v1742 = vsel %vm1346, %v1741, %v1737
  %v1743 = vlaneseq
  %v1744 = vshrl.u32 %v1743, 7
  %v1745 = vsub.s32 %v1238, %v1744
  %v1746 = vrot.slane %v1077, %v1745
  %v1747 = vlaneseq
  %v1748 = vshrl.u32 %v1747, 7
  %v1749 = vsub.s32 %v1243, %v1748
  %v1750 = vrot.slane %v1078, %v1749
  %v1751 = vsel %vm1248, %v1750, %v1746
  %v1752 = vlaneseq
  %v1753 = vshrl.u32 %v1752, 7
  %v1754 = vsub.s32 %v1250, %v1753
  %v1755 = vrot.slane %v1079, %v1754
  %v1756 = vsel %vm1255, %v1755, %v1751
  %v1757 = vlaneseq
  %v1758 = vshrl.u32 %v1757, 7
  %v1759 = vsub.s32 %v1257, %v1758
  %v1760 = vrot.slane %v1080, %v1759
  %v1761 = vsel %vm1262, %v1760, %v1756
  %v1762 = vlaneseq
  %v1763 = vshrl.u32 %v1762, 7
  %v1764 = vsub.s32 %v1264, %v1763
  %v1765 = vrot.slane %v1081, %v1764
  %v1766 = vsel %vm1269, %v1765, %v1761
  %v1767 = vlaneseq
  %v1768 = vshrl.u32 %v1767, 7
  %v1769 = vsub.s32 %v1271, %v1768
  %v1770 = vrot.slane %v1082, %v1769
  %v1771 = vsel %vm1276, %v1770, %v1766
  %v1772 = vlaneseq
  %v1773 = vshrl.u32 %v1772, 7
  %v1774 = vsub.s32 %v1278, %v1773
  %v1775 = vrot.slane %v1083, %v1774
  %v1776 = vsel %vm1283, %v1775, %v1771
  %v1777 = vlaneseq
  %v1778 = vshrl.u32 %v1777, 7
  %v1779 = vsub.s32 %v1285, %v1778
  %v1780 = vrot.slane %v1084, %v1779
  %v1781 = vsel %vm1290, %v1780, %v1776
  %v1782 = vlaneseq
  %v1783 = vshrl.u32 %v1782, 7
  %v1784 = vsub.s32 %v1292, %v1783
  %v1785 = vrot.slane %v1085, %v1784
  %v1786 = vsel %vm1297, %v1785, %v1781
  %v1787 = vlaneseq
  %v1788 = vshrl.u32 %v1787, 7
  %v1789 = vsub.s32 %v1299, %v1788
  %v1790 = vrot.slane %v1086, %v1789
  %v1791 = vsel %vm1304, %v1790, %v1786
  %v1792 = vlaneseq
  %v1793 = vshrl.u32 %v1792, 7
  %v1794 = vsub.s32 %v1306, %v1793
  %v1795 = vrot.slane %v1087, %v1794
  %v1796 = vsel %vm1311, %v1795, %v1791
  %v1797 = vlaneseq
  %v1798 = vshrl.u32 %v1797, 7
  %v1799 = vsub.s32 %v1313, %v1798
  %v1800 = vrot.slane %v1088, %v1799
  %v1801 = vsel %vm1318, %v1800, %v1796
  %v1802 = vlaneseq
  %v1803 = vshrl.u32 %v1802, 7
  %v1804 = vsub.s32 %v1320, %v1803
  %v1805 = vrot.slane %v1089, %v1804
  %v1806 = vsel %vm1325, %v1805, %v1801
  %v1807 = vlaneseq
  %v1808 = vshrl.u32 %v1807, 7
  %v1809 = vsub.s32 %v1327, %v1808
  %v1810 = vrot.slane %v1090, %v1809
  %v1811 = vsel %vm1332, %v1810, %v1806
  %v1812 = vlaneseq
  %v1813 = vshrl.u32 %v1812, 7
  %v1814 = vsub.s32 %v1334, %v1813
  %v1815 = vrot.slane %v1091, %v1814
  %v1816 = vsel %vm1339, %v1815, %v1811
  %v1817 = vlaneseq
  %v1818 = vshrl.u32 %v1817, 7
  %v1819 = vsub.s32 %v1341, %v1818
  %v1820 = vrot.slane %v1092, %v1819
  %v1821 = vsel %vm1346, %v1820, %v1816
  %v1822 = vlaneseq
  %v1823 = vshrl.u32 %v1822, 7
  %v1824 = vsub.s32 %v1238, %v1823
  %v1825 = vrot.slane %v1093, %v1824
  %v1826 = vlaneseq
  %v1827 = vshrl.u32 %v1826, 7
  %v1828 = vsub.s32 %v1243, %v1827
  %v1829 = vrot.slane %v1094, %v1828
  %v1830 = vsel %vm1248, %v1829, %v1825
  %v1831 = vlaneseq
  %v1832 = vshrl.u32 %v1831, 7
  %v1833 = vsub.s32 %v1250, %v1832
  %v1834 = vrot.slane %v1095, %v1833
  %v1835 = vsel %vm1255, %v1834, %v1830
  %v1836 = vlaneseq
  %v1837 = vshrl.u32 %v1836, 7
  %v1838 = vsub.s32 %v1257, %v1837
  %v1839 = vrot.slane %v1096, %v1838
  %v1840 = vsel %vm1262, %v1839, %v1835
  %v1841 = vlaneseq
  %v1842 = vshrl.u32 %v1841, 7
  %v1843 = vsub.s32 %v1264, %v1842
  %v1844 = vrot.slane %v1097, %v1843
  %v1845 = vsel %vm1269, %v1844, %v1840
  %v1846 = vlaneseq
  %v1847 = vshrl.u32 %v1846, 7
  %v1848 = vsub.s32 %v1271, %v1847
  %v1849 = vrot.slane %v1098, %v1848
  %v1850 = vsel %vm1276, %v1849, %v1845
  %v1851 = vlaneseq
  %v1852 = vshrl.u32 %v1851, 7
  %v1853 = vsub.s32 %v1278, %v1852
  %v1854 = vrot.slane %v1099, %v1853
  %v1855 = vsel %vm1283, %v1854, %v1850
  %v1856 = vlaneseq
  %v1857 = vshrl.u32 %v1856, 7
  %v1858 = vsub.s32 %v1285, %v1857
  %v1859 = vrot.slane %v1100, %v1858
  %v1860 = vsel %vm1290, %v1859, %v1855
  %v1861 = vlaneseq
  %v1862 = vshrl.u32 %v1861, 7
  %v1863 = vsub.s32 %v1292, %v1862
  %v1864 = vrot.slane %v1101, %v1863
  %v1865 = vsel %vm1297, %v1864, %v1860
  %v1866 = vlaneseq
  %v1867 = vshrl.u32 %v1866, 7
  %v1868 = vsub.s32 %v1299, %v1867
  %v1869 = vrot.slane %v1102, %v1868
  %v1870 = vsel %vm1304, %v1869, %v1865
  %v1871 = vlaneseq
  %v1872 = vshrl.u32 %v1871, 7
  %v1873 = vsub.s32 %v1306, %v1872
  %v1874 = vrot.slane %v1103, %v1873
  %v1875 = vsel %vm1311, %v1874, %v1870
  %v1876 = vlaneseq
  %v1877 = vshrl.u32 %v1876, 7
  %v1878 = vsub.s32 %v1313, %v1877
  %v1879 = vrot.slane %v1104, %v1878
  %v1880 = vsel %vm1318, %v1879, %v1875
  %v1881 = vlaneseq
  %v1882 = vshrl.u32 %v1881, 7
  %v1883 = vsub.s32 %v1320, %v1882
  %v1884 = vrot.slane %v1105, %v1883
  %v1885 = vsel %vm1325, %v1884, %v1880
  %v1886 = vlaneseq
  %v1887 = vshrl.u32 %v1886, 7
  %v1888 = vsub.s32 %v1327, %v1887
  %v1889 = vrot.slane %v1106, %v1888
  %v1890 = vsel %vm1332, %v1889, %v1885
  %v1891 = vlaneseq
  %v1892 = vshrl.u32 %v1891, 7
  %v1893 = vsub.s32 %v1334, %v1892
  %v1894 = vrot.slane %v1107, %v1893
  %v1895 = vsel %vm1339, %v1894, %v1890
  %v1896 = vlaneseq
  %v1897 = vshrl.u32 %v1896, 7
  %v1898 = vsub.s32 %v1341, %v1897
  %v1899 = vrot.slane %v1108, %v1898
  %v1900 = vsel %vm1346, %v1899, %v1895
  %vm1901 = vcmask 1041409
  %v1902 = vsel %vm1901, %v1426, %v1347
  %vm1903 = vcmask 1042434
  %v1904 = vsel %vm1903, %v1505, %v1902
  %vm1905 = vcmask 1043459
  %v1906 = vsel %vm1905, %v1584, %v1904
  %vm1907 = vcmask 1044484
  %v1908 = vsel %vm1907, %v1663, %v1906
  %vm1909 = vcmask 1045509
  %v1910 = vsel %vm1909, %v1742, %v1908
  %vm1911 = vcmask 1046534
  %v1912 = vsel %vm1911, %v1821, %v1910
  %vm1913 = vcmask 1047559
  %v1914 = vsel %vm1913, %v1900, %v1912
  %1916 = vst [vmem:[%s6] sm:$0xff] %v1914
  // Predicated region
  $region30: #{score_network.1} parent=0 // pred_check
    _
  $region31: #{score_network.1} parent=0 // pred_check_branch
    %1918 = sbr.rel (0) target = $region33
  $region32: #{score_network.1} parent=0 // pred_region
    _
  $region33: #{score_network.1} parent=0 // pred_fallthru
    _
  // Predicated region
  $region34: #{score_network.1} parent=0 // pred_check
    _
  $region35: #{score_network.1} parent=0 // pred_check_branch
    %1920 = sbr.rel (0) target = $region37
  $region36: #{score_network.1} parent=0 // pred_region
    _
  $region37: #{score_network.1} parent=0 // pred_fallthru
    _

</llo_original>
